<compile_context>
chip_gen: v7x
topology: tpu7x:2x2x1
jax: 0.10.0
libtpu: 0.0.40
codegen_flags: <defaults>
</compile_context>

<pallas_src>
import functools

import jax
import jax.numpy as jnp
from jax import lax
from jax.experimental import pallas as pl
from jax.experimental.pallas import tpu as pltpu


def _round_up(x, m):
    return ((x + m - 1) // m) * m


def _vmem_capacity_bytes():
    try:
        return int(pltpu.get_tpu_info().vmem_capacity_bytes)
    except Exception:
        return 64 * 1024 * 1024  # conservative (v7x-sized) default


# ---------------------------------------------------------------------------
# Path A: table resident in VMEM (small / medium tables).
# ---------------------------------------------------------------------------
def _vmem_gather_kernel(idx_ref, table_ref, o_ref, *,
                        rows_per_block, group, embed_dim, chunk):
    """Gather rows from a VMEM-resident embedding table.

    idx_ref   : SMEM (n_pad,) int32   -- scalar-prefetched flat lookup indices
    table_ref : VMEM (vocab, embed_dim), resident across the whole grid
    o_ref     : VMEM (rows_per_block, group*embed_dim) lane-dense output block
    """
    base = pl.program_id(0) * (rows_per_block * group)

    def chunk_body(c, carry):
        p0 = c * chunk
        for u in range(chunk):            # static 8-way unroll per chunk
            p = p0 + u
            for g in range(group):        # static: lane-dense packing of G rows
                row = idx_ref[base + p * group + g]
                o_ref[p, g * embed_dim:(g + 1) * embed_dim] = table_ref[row, :]
        return carry

    lax.fori_loop(0, rows_per_block // chunk, chunk_body, 0)


def _embedding_vmem_path(flat_idx, table, n, row_tile, vmem_cap):
    vocab, embed_dim = table.shape
    itemsize = jnp.dtype(table.dtype).itemsize

    # Lane-dense packing group: G gathered rows per 128-lane output row.
    if embed_dim < 128 and 128 % embed_dim == 0:
        group = 128 // embed_dim
    else:
        group = 1

    unit = 8 * group                      # rows covered by 8 packed sublanes
    row_tile = max(unit, (min(row_tile, _round_up(n, unit)) // unit) * unit)
    n_pad = _round_up(n, row_tile)
    if n_pad != n:
        flat_idx = jnp.pad(flat_idx, (0, n_pad - n))   # padded rows gather row 0

    rows_per_block = row_tile // group    # multiple of 8 by construction
    chunk = 8 if rows_per_block % 8 == 0 else rows_per_block
    grid = (n_pad // row_tile,)

    table_vmem = _round_up(vocab, 8) * _round_up(embed_dim, 128) * itemsize
    block_vmem = rows_per_block * _round_up(group * embed_dim, 128) * itemsize
    vmem_limit = int(min(vmem_cap,
                         max(16 << 20, 2 * table_vmem + 2 * block_vmem + (4 << 20))))
    bytes_moved = int(2 * n_pad * embed_dim * itemsize + n_pad * 4 + table_vmem)

    kernel = functools.partial(_vmem_gather_kernel,
                               rows_per_block=rows_per_block, group=group,
                               embed_dim=embed_dim, chunk=chunk)

    out = pl.pallas_call(
        kernel,
        out_shape=jax.ShapeDtypeStruct((n_pad // group, group * embed_dim),
                                       table.dtype),
        grid_spec=pltpu.PrefetchScalarGridSpec(
            num_scalar_prefetch=1,                                # flat_idx -> SMEM
            grid=grid,
            in_specs=[pl.BlockSpec((vocab, embed_dim), lambda i, idx: (0, 0))],
            out_specs=pl.BlockSpec((rows_per_block, group * embed_dim),
                                   lambda i, idx: (i, 0)),
        ),
        compiler_params=pltpu.CompilerParams(
            dimension_semantics=("parallel",),
            vmem_limit_bytes=vmem_limit),
        cost_estimate=pl.CostEstimate(flops=0, transcendentals=0,
                                      bytes_accessed=bytes_moved),
    )(flat_idx, table)

    # (n_pad//G, G*E) -> (n_pad, E) is a free row-major reshape.
    return out.reshape(n_pad, embed_dim)[:n]


# ---------------------------------------------------------------------------
# Path B: table stays in HBM; per-row DMA gather, issued in chunks.
# ---------------------------------------------------------------------------
def _hbm_gather_kernel(idx_ref, table_ref, o_ref, copy_sems, *, row_tile, chunk):
    """Gather `row_tile` table rows into the output block via chunked HBM DMAs.

    idx_ref   : SMEM (n_pad,) int32   -- scalar-prefetched flat lookup indices
    table_ref : HBM  (vocab, embed_dim)
    o_ref     : VMEM (row_tile, embed_dim) output block for this grid step
    copy_sems : DMA semaphores, one per in-flight copy of a chunk
    """
    base = pl.program_id(0) * row_tile

    def chunk_body(c, carry):
        start = c * chunk
        copies = []
        # Issue the whole chunk back-to-back so 8-16 DMAs are in flight, then wait.
        for j in range(chunk):
            row = idx_ref[base + start + j]
            cp = pltpu.make_async_copy(table_ref.at[row],
                                       o_ref.at[start + j],
                                       copy_sems.at[j])
            cp.start()
            copies.append(cp)
        for cp in copies:
            cp.wait()
        return carry

    lax.fori_loop(0, row_tile // chunk, chunk_body, 0)


def _embedding_hbm_path(flat_idx, table, n, row_tile, vmem_cap):
    vocab, embed_dim = table.shape
    itemsize = jnp.dtype(table.dtype).itemsize

    row_tile = max(8, (min(row_tile, _round_up(n, 8)) // 8) * 8)
    chunk = 16 if row_tile % 16 == 0 else 8
    n_pad = _round_up(n, row_tile)
    if n_pad != n:
        flat_idx = jnp.pad(flat_idx, (0, n_pad - n))

    block_vmem = row_tile * _round_up(embed_dim, 128) * itemsize
    vmem_limit = int(min(vmem_cap, max(16 << 20, 2 * block_vmem + (4 << 20))))
    bytes_moved = int(2 * n_pad * embed_dim * itemsize + n_pad * 4)

    kernel = functools.partial(_hbm_gather_kernel, row_tile=row_tile, chunk=chunk)
    out = pl.pallas_call(
        kernel,
        out_shape=jax.ShapeDtypeStruct((n_pad, embed_dim), table.dtype),
        grid_spec=pltpu.PrefetchScalarGridSpec(
            num_scalar_prefetch=1,                                # flat_idx -> SMEM
            grid=(n_pad // row_tile,),
            in_specs=[pl.BlockSpec(memory_space=pl.ANY)],         # table stays in HBM
            out_specs=pl.BlockSpec((row_tile, embed_dim), lambda i, idx: (i, 0)),
            scratch_shapes=[pltpu.SemaphoreType.DMA((chunk,))],
        ),
        compiler_params=pltpu.CompilerParams(
            dimension_semantics=("parallel",),
            vmem_limit_bytes=vmem_limit),
        cost_estimate=pl.CostEstimate(flops=0, transcendentals=0,
                                      bytes_accessed=bytes_moved),
    )(flat_idx, table)
    return out[:n]


# ---------------------------------------------------------------------------
# Public wrapper (== FeaturesEmbedding.forward)
# ---------------------------------------------------------------------------
def features_embedding(indices, table, *, row_tile=256, vmem_budget_bytes=None,
                       force_hbm_gather=False):
    """Pallas-TPU equivalent of torch.nn.Embedding(vocab, embed_dim)(indices).

    indices: int array (batch, num_fields)
    table:   float array (vocab, embed_dim)
    returns: (batch, num_fields, embed_dim)
    """
    batch, num_fields = indices.shape
    vocab, embed_dim = table.shape
    n = batch * num_fields
    itemsize = jnp.dtype(table.dtype).itemsize

    # Clamp indices: an out-of-range index would otherwise drive an OOB HBM DMA.
    flat_idx = jnp.clip(indices.reshape(-1).astype(jnp.int32), 0, vocab - 1)

    vmem_cap = _vmem_capacity_bytes()
    if vmem_budget_bytes is None:
        vmem_budget_bytes = vmem_cap // 2      # headroom for double buffers / outputs
    table_vmem = _round_up(vocab, 8) * _round_up(embed_dim, 128) * itemsize

    if (not force_hbm_gather) and (2 * table_vmem <= vmem_budget_bytes):
        out = _embedding_vmem_path(flat_idx, table, n, row_tile, vmem_cap)
    else:
        out = _embedding_hbm_path(flat_idx, table, n, row_tile, vmem_cap)
    return out.reshape(batch, num_fields, embed_dim)


if __name__ == "__main__":
    key = jax.random.PRNGKey(0)
    batch, num_fields = 8, 4
    vocab, embed_dim = 32, 16

    k_idx, k_tab = jax.random.split(key)
    indices = jax.random.randint(k_idx, (batch, num_fields), 0, vocab,
                                 dtype=jnp.int32)
    table = jax.random.normal(k_tab, (vocab, embed_dim), jnp.float32)

    # Pure-JAX reference: nn.Embedding forward is a plain row gather.
    y_ref = jnp.take(table, indices, axis=0)

    # Fast path (table resident in VMEM) -- the default for this table size.
    y = jax.block_until_ready(features_embedding(indices, table))
    assert y.shape == (batch, num_fields, embed_dim), y.shape
    assert jnp.array_equal(y, y_ref), "VMEM-resident path mismatch"

    # HBM DMA-gather path (forced), as used for tables too large for VMEM.
    y2 = jax.block_until_ready(
        features_embedding(indices, table, row_tile=16, force_hbm_gather=True))
    assert y2.shape == (batch, num_fields, embed_dim), y2.shape
    assert jnp.array_equal(y2, y_ref), "HBM gather path mismatch"

    print("KERNEL_OK")
</pallas_src>

<mosaic_0001>
module attributes {stable_mosaic.version = 11 : i64} {
  func.func @_vmem_gather_kernel(%arg0: i32, %arg1: memref<64xi32, #tpu.memory_space<smem>>, %arg2: memref<32x16xf32, #tpu.memory_space<vmem>>, %arg3: memref<8x128xf32, #tpu.memory_space<vmem>>) attributes {dimension_semantics = [#tpu.dimension_semantics<parallel>], iteration_bounds = array<i64: 1>, scalar_prefetch = 1 : i64, scratch_operands = 0 : i64, tpu.core_type = #tpu.core_type<tc>, window_params = [{pipeline_mode = #tpu.pipeline_mode<synchronous>, transform_indices = @transform_0, window_bounds = array<i64: 32, 16>}, {transform_indices = @transform_1, window_bounds = array<i64: 8, 128>}]} {
    %c64_i32 = arith.constant 64 : i32
    %0 = arith.muli %arg0, %c64_i32 : i32
    %c0_i32 = arith.constant 0 : i32
    %c8_i32 = arith.constant 8 : i32
    %1 = arith.muli %c0_i32, %c8_i32 : i32
    %c0_i32_0 = arith.constant 0 : i32
    %2 = arith.addi %1, %c0_i32_0 : i32
    %c8_i32_1 = arith.constant 8 : i32
    %3 = arith.muli %2, %c8_i32_1 : i32
    %4 = arith.addi %0, %3 : i32
    %c0_i32_2 = arith.constant 0 : i32
    %5 = arith.addi %4, %c0_i32_2 : i32
    %6 = arith.index_cast %5 : i32 to index
    %7 = memref.load %arg1[%6] : memref<64xi32, #tpu.memory_space<smem>>
    %8 = arith.index_cast %7 : i32 to index
    %c0 = arith.constant 0 : index
    %9 = vector.load %arg2[%8, %c0] : memref<32x16xf32, #tpu.memory_space<vmem>>, vector<1x16xf32>
    %10 = vector.shape_cast %9 : vector<1x16xf32> to vector<16xf32>
    %11 = arith.index_cast %2 : i32 to index
    %c0_3 = arith.constant 0 : index
    %12 = vector.load %arg3[%11, %c0_3] : memref<8x128xf32, #tpu.memory_space<vmem>>, vector<1x16xf32>
    %13 = vector.shape_cast %12 : vector<1x16xf32> to vector<16xf32>
    %14 = vector.shape_cast %10 : vector<16xf32> to vector<1x16xf32>
    tpu.vector_store %arg3[%11, %c0_3], %14 {strides = array<i32>} : memref<8x128xf32, #tpu.memory_space<vmem>>, vector<1x16xf32>,
    %c8_i32_4 = arith.constant 8 : i32
    %15 = arith.muli %2, %c8_i32_4 : i32
    %16 = arith.addi %0, %15 : i32
    %c1_i32 = arith.constant 1 : i32
    %17 = arith.addi %16, %c1_i32 : i32
    %18 = arith.index_cast %17 : i32 to index
    %19 = memref.load %arg1[%18] : memref<64xi32, #tpu.memory_space<smem>>
    %20 = arith.index_cast %19 : i32 to index
    %c0_5 = arith.constant 0 : index
    %21 = vector.load %arg2[%20, %c0_5] : memref<32x16xf32, #tpu.memory_space<vmem>>, vector<1x16xf32>
    %22 = vector.shape_cast %21 : vector<1x16xf32> to vector<16xf32>
    %23 = arith.index_cast %2 : i32 to index
    %c16 = arith.constant 16 : index
    %24 = vector.load %arg3[%23, %c16] : memref<8x128xf32, #tpu.memory_space<vmem>>, vector<1x16xf32>
    %25 = vector.shape_cast %24 : vector<1x16xf32> to vector<16xf32>
    %26 = vector.shape_cast %22 : vector<16xf32> to vector<1x16xf32>
    tpu.vector_store %arg3[%23, %c16], %26 {strides = array<i32>} : memref<8x128xf32, #tpu.memory_space<vmem>>, vector<1x16xf32>,
    %c8_i32_6 = arith.constant 8 : i32
    %27 = arith.muli %2, %c8_i32_6 : i32
    %28 = arith.addi %0, %27 : i32
    %c2_i32 = arith.constant 2 : i32
    %29 = arith.addi %28, %c2_i32 : i32
    %30 = arith.index_cast %29 : i32 to index
    %31 = memref.load %arg1[%30] : memref<64xi32, #tpu.memory_space<smem>>
    %32 = arith.index_cast %31 : i32 to index
    %c0_7 = arith.constant 0 : index
    %33 = vector.load %arg2[%32, %c0_7] : memref<32x16xf32, #tpu.memory_space<vmem>>, vector<1x16xf32>
    %34 = vector.shape_cast %33 : vector<1x16xf32> to vector<16xf32>
    %35 = arith.index_cast %2 : i32 to index
    %c32 = arith.constant 32 : index
    %36 = vector.load %arg3[%35, %c32] : memref<8x128xf32, #tpu.memory_space<vmem>>, vector<1x16xf32>
    %37 = vector.shape_cast %36 : vector<1x16xf32> to vector<16xf32>
    %38 = vector.shape_cast %34 : vector<16xf32> to vector<1x16xf32>
    tpu.vector_store %arg3[%35, %c32], %38 {strides = array<i32>} : memref<8x128xf32, #tpu.memory_space<vmem>>, vector<1x16xf32>,
    %c8_i32_8 = arith.constant 8 : i32
    %39 = arith.muli %2, %c8_i32_8 : i32
    %40 = arith.addi %0, %39 : i32
    %c3_i32 = arith.constant 3 : i32
    %41 = arith.addi %40, %c3_i32 : i32
    %42 = arith.index_cast %41 : i32 to index
    %43 = memref.load %arg1[%42] : memref<64xi32, #tpu.memory_space<smem>>
    %44 = arith.index_cast %43 : i32 to index
    %c0_9 = arith.constant 0 : index
    %45 = vector.load %arg2[%44, %c0_9] : memref<32x16xf32, #tpu.memory_space<vmem>>, vector<1x16xf32>
    %46 = vector.shape_cast %45 : vector<1x16xf32> to vector<16xf32>
    %47 = arith.index_cast %2 : i32 to index
    %c48 = arith.constant 48 : index
    %48 = vector.load %arg3[%47, %c48] : memref<8x128xf32, #tpu.memory_space<vmem>>, vector<1x16xf32>
    %49 = vector.shape_cast %48 : vector<1x16xf32> to vector<16xf32>
    %50 = vector.shape_cast %46 : vector<16xf32> to vector<1x16xf32>
    tpu.vector_store %arg3[%47, %c48], %50 {strides = array<i32>} : memref<8x128xf32, #tpu.memory_space<vmem>>, vector<1x16xf32>,
    %c8_i32_10 = arith.constant 8 : i32
    %51 = arith.muli %2, %c8_i32_10 : i32
    %52 = arith.addi %0, %51 : i32
    %c4_i32 = arith.constant 4 : i32
    %53 = arith.addi %52, %c4_i32 : i32
    %54 = arith.index_cast %53 : i32 to index
    %55 = memref.load %arg1[%54] : memref<64xi32, #tpu.memory_space<smem>>
    %56 = arith.index_cast %55 : i32 to index
    %c0_11 = arith.constant 0 : index
    %57 = vector.load %arg2[%56, %c0_11] : memref<32x16xf32, #tpu.memory_space<vmem>>, vector<1x16xf32>
    %58 = vector.shape_cast %57 : vector<1x16xf32> to vector<16xf32>
    %59 = arith.index_cast %2 : i32 to index
    %c64 = arith.constant 64 : index
    %60 = vector.load %arg3[%59, %c64] : memref<8x128xf32, #tpu.memory_space<vmem>>, vector<1x16xf32>
    %61 = vector.shape_cast %60 : vector<1x16xf32> to vector<16xf32>
    %62 = vector.shape_cast %58 : vector<16xf32> to vector<1x16xf32>
    tpu.vector_store %arg3[%59, %c64], %62 {strides = array<i32>} : memref<8x128xf32, #tpu.memory_space<vmem>>, vector<1x16xf32>,
    %c8_i32_12 = arith.constant 8 : i32
    %63 = arith.muli %2, %c8_i32_12 : i32
    %64 = arith.addi %0, %63 : i32
    %c5_i32 = arith.constant 5 : i32
    %65 = arith.addi %64, %c5_i32 : i32
    %66 = arith.index_cast %65 : i32 to index
    %67 = memref.load %arg1[%66] : memref<64xi32, #tpu.memory_space<smem>>
    %68 = arith.index_cast %67 : i32 to index
    %c0_13 = arith.constant 0 : index
    %69 = vector.load %arg2[%68, %c0_13] : memref<32x16xf32, #tpu.memory_space<vmem>>, vector<1x16xf32>
    %70 = vector.shape_cast %69 : vector<1x16xf32> to vector<16xf32>
    %71 = arith.index_cast %2 : i32 to index
    %c80 = arith.constant 80 : index
    %72 = vector.load %arg3[%71, %c80] : memref<8x128xf32, #tpu.memory_space<vmem>>, vector<1x16xf32>
    %73 = vector.shape_cast %72 : vector<1x16xf32> to vector<16xf32>
    %74 = vector.shape_cast %70 : vector<16xf32> to vector<1x16xf32>
    tpu.vector_store %arg3[%71, %c80], %74 {strides = array<i32>} : memref<8x128xf32, #tpu.memory_space<vmem>>, vector<1x16xf32>,
    %c8_i32_14 = arith.constant 8 : i32
    %75 = arith.muli %2, %c8_i32_14 : i32
    %76 = arith.addi %0, %75 : i32
    %c6_i32 = arith.constant 6 : i32
    %77 = arith.addi %76, %c6_i32 : i32
    %78 = arith.index_cast %77 : i32 to index
    %79 = memref.load %arg1[%78] : memref<64xi32, #tpu.memory_space<smem>>
    %80 = arith.index_cast %79 : i32 to index
    %c0_15 = arith.constant 0 : index
    %81 = vector.load %arg2[%80, %c0_15] : memref<32x16xf32, #tpu.memory_space<vmem>>, vector<1x16xf32>
    %82 = vector.shape_cast %81 : vector<1x16xf32> to vector<16xf32>
    %83 = arith.index_cast %2 : i32 to index
    %c96 = arith.constant 96 : index
    %84 = vector.load %arg3[%83, %c96] : memref<8x128xf32, #tpu.memory_space<vmem>>, vector<1x16xf32>
    %85 = vector.shape_cast %84 : vector<1x16xf32> to vector<16xf32>
    %86 = vector.shape_cast %82 : vector<16xf32> to vector<1x16xf32>
    tpu.vector_store %arg3[%83, %c96], %86 {strides = array<i32>} : memref<8x128xf32, #tpu.memory_space<vmem>>, vector<1x16xf32>,
    %c8_i32_16 = arith.constant 8 : i32
    %87 = arith.muli %2, %c8_i32_16 : i32
    %88 = arith.addi %0, %87 : i32
    %c7_i32 = arith.constant 7 : i32
    %89 = arith.addi %88, %c7_i32 : i32
    %90 = arith.index_cast %89 : i32 to index
    %91 = memref.load %arg1[%90] : memref<64xi32, #tpu.memory_space<smem>>
    %92 = arith.index_cast %91 : i32 to index
    %c0_17 = arith.constant 0 : index
    %93 = vector.load %arg2[%92, %c0_17] : memref<32x16xf32, #tpu.memory_space<vmem>>, vector<1x16xf32>
    %94 = vector.shape_cast %93 : vector<1x16xf32> to vector<16xf32>
    %95 = arith.index_cast %2 : i32 to index
    %c112 = arith.constant 112 : index
    %96 = vector.load %arg3[%95, %c112] : memref<8x128xf32, #tpu.memory_space<vmem>>, vector<1x16xf32>
    %97 = vector.shape_cast %96 : vector<1x16xf32> to vector<16xf32>
    %98 = vector.shape_cast %94 : vector<16xf32> to vector<1x16xf32>
    tpu.vector_store %arg3[%95, %c112], %98 {strides = array<i32>} : memref<8x128xf32, #tpu.memory_space<vmem>>, vector<1x16xf32>,
    %c1_i32_18 = arith.constant 1 : i32
    %99 = arith.addi %1, %c1_i32_18 : i32
    %c8_i32_19 = arith.constant 8 : i32
    %100 = arith.muli %99, %c8_i32_19 : i32
    %101 = arith.addi %0, %100 : i32
    %c0_i32_20 = arith.constant 0 : i32
    %102 = arith.addi %101, %c0_i32_20 : i32
    %103 = arith.index_cast %102 : i32 to index
    %104 = memref.load %arg1[%103] : memref<64xi32, #tpu.memory_space<smem>>
    %105 = arith.index_cast %104 : i32 to index
    %c0_21 = arith.constant 0 : index
    %106 = vector.load %arg2[%105, %c0_21] : memref<32x16xf32, #tpu.memory_space<vmem>>, vector<1x16xf32>
    %107 = vector.shape_cast %106 : vector<1x16xf32> to vector<16xf32>
    %108 = arith.index_cast %99 : i32 to index
    %c0_22 = arith.constant 0 : index
    %109 = vector.load %arg3[%108, %c0_22] : memref<8x128xf32, #tpu.memory_space<vmem>>, vector<1x16xf32>
    %110 = vector.shape_cast %109 : vector<1x16xf32> to vector<16xf32>
    %111 = vector.shape_cast %107 : vector<16xf32> to vector<1x16xf32>
    tpu.vector_store %arg3[%108, %c0_22], %111 {strides = array<i32>} : memref<8x128xf32, #tpu.memory_space<vmem>>, vector<1x16xf32>,
    %c8_i32_23 = arith.constant 8 : i32
    %112 = arith.muli %99, %c8_i32_23 : i32
    %113 = arith.addi %0, %112 : i32
    %c1_i32_24 = arith.constant 1 : i32
    %114 = arith.addi %113, %c1_i32_24 : i32
    %115 = arith.index_cast %114 : i32 to index
    %116 = memref.load %arg1[%115] : memref<64xi32, #tpu.memory_space<smem>>
    %117 = arith.index_cast %116 : i32 to index
    %c0_25 = arith.constant 0 : index
    %118 = vector.load %arg2[%117, %c0_25] : memref<32x16xf32, #tpu.memory_space<vmem>>, vector<1x16xf32>
    %119 = vector.shape_cast %118 : vector<1x16xf32> to vector<16xf32>
    %120 = arith.index_cast %99 : i32 to index
    %c16_26 = arith.constant 16 : index
    %121 = vector.load %arg3[%120, %c16_26] : memref<8x128xf32, #tpu.memory_space<vmem>>, vector<1x16xf32>
    %122 = vector.shape_cast %121 : vector<1x16xf32> to vector<16xf32>
    %123 = vector.shape_cast %119 : vector<16xf32> to vector<1x16xf32>
    tpu.vector_store %arg3[%120, %c16_26], %123 {strides = array<i32>} : memref<8x128xf32, #tpu.memory_space<vmem>>, vector<1x16xf32>,
    %c8_i32_27 = arith.constant 8 : i32
    %124 = arith.muli %99, %c8_i32_27 : i32
    %125 = arith.addi %0, %124 : i32
    %c2_i32_28 = arith.constant 2 : i32
    %126 = arith.addi %125, %c2_i32_28 : i32
    %127 = arith.index_cast %126 : i32 to index
    %128 = memref.load %arg1[%127] : memref<64xi32, #tpu.memory_space<smem>>
    %129 = arith.index_cast %128 : i32 to index
    %c0_29 = arith.constant 0 : index
    %130 = vector.load %arg2[%129, %c0_29] : memref<32x16xf32, #tpu.memory_space<vmem>>, vector<1x16xf32>
    %131 = vector.shape_cast %130 : vector<1x16xf32> to vector<16xf32>
    %132 = arith.index_cast %99 : i32 to index
    %c32_30 = arith.constant 32 : index
    %133 = vector.load %arg3[%132, %c32_30] : memref<8x128xf32, #tpu.memory_space<vmem>>, vector<1x16xf32>
    %134 = vector.shape_cast %133 : vector<1x16xf32> to vector<16xf32>
    %135 = vector.shape_cast %131 : vector<16xf32> to vector<1x16xf32>
    tpu.vector_store %arg3[%132, %c32_30], %135 {strides = array<i32>} : memref<8x128xf32, #tpu.memory_space<vmem>>, vector<1x16xf32>,
    %c8_i32_31 = arith.constant 8 : i32
    %136 = arith.muli %99, %c8_i32_31 : i32
    %137 = arith.addi %0, %136 : i32
    %c3_i32_32 = arith.constant 3 : i32
    %138 = arith.addi %137, %c3_i32_32 : i32
    %139 = arith.index_cast %138 : i32 to index
    %140 = memref.load %arg1[%139] : memref<64xi32, #tpu.memory_space<smem>>
    %141 = arith.index_cast %140 : i32 to index
    %c0_33 = arith.constant 0 : index
    %142 = vector.load %arg2[%141, %c0_33] : memref<32x16xf32, #tpu.memory_space<vmem>>, vector<1x16xf32>
    %143 = vector.shape_cast %142 : vector<1x16xf32> to vector<16xf32>
    %144 = arith.index_cast %99 : i32 to index
    %c48_34 = arith.constant 48 : index
    %145 = vector.load %arg3[%144, %c48_34] : memref<8x128xf32, #tpu.memory_space<vmem>>, vector<1x16xf32>
    %146 = vector.shape_cast %145 : vector<1x16xf32> to vector<16xf32>
    %147 = vector.shape_cast %143 : vector<16xf32> to vector<1x16xf32>
    tpu.vector_store %arg3[%144, %c48_34], %147 {strides = array<i32>} : memref<8x128xf32, #tpu.memory_space<vmem>>, vector<1x16xf32>,
    %c8_i32_35 = arith.constant 8 : i32
    %148 = arith.muli %99, %c8_i32_35 : i32
    %149 = arith.addi %0, %148 : i32
    %c4_i32_36 = arith.constant 4 : i32
    %150 = arith.addi %149, %c4_i32_36 : i32
    %151 = arith.index_cast %150 : i32 to index
    %152 = memref.load %arg1[%151] : memref<64xi32, #tpu.memory_space<smem>>
    %153 = arith.index_cast %152 : i32 to index
    %c0_37 = arith.constant 0 : index
    %154 = vector.load %arg2[%153, %c0_37] : memref<32x16xf32, #tpu.memory_space<vmem>>, vector<1x16xf32>
    %155 = vector.shape_cast %154 : vector<1x16xf32> to vector<16xf32>
    %156 = arith.index_cast %99 : i32 to index
    %c64_38 = arith.constant 64 : index
    %157 = vector.load %arg3[%156, %c64_38] : memref<8x128xf32, #tpu.memory_space<vmem>>, vector<1x16xf32>
    %158 = vector.shape_cast %157 : vector<1x16xf32> to vector<16xf32>
    %159 = vector.shape_cast %155 : vector<16xf32> to vector<1x16xf32>
    tpu.vector_store %arg3[%156, %c64_38], %159 {strides = array<i32>} : memref<8x128xf32, #tpu.memory_space<vmem>>, vector<1x16xf32>,
    %c8_i32_39 = arith.constant 8 : i32
    %160 = arith.muli %99, %c8_i32_39 : i32
    %161 = arith.addi %0, %160 : i32
    %c5_i32_40 = arith.constant 5 : i32
    %162 = arith.addi %161, %c5_i32_40 : i32
    %163 = arith.index_cast %162 : i32 to index
    %164 = memref.load %arg1[%163] : memref<64xi32, #tpu.memory_space<smem>>
    %165 = arith.index_cast %164 : i32 to index
    %c0_41 = arith.constant 0 : index
    %166 = vector.load %arg2[%165, %c0_41] : memref<32x16xf32, #tpu.memory_space<vmem>>, vector<1x16xf32>
    %167 = vector.shape_cast %166 : vector<1x16xf32> to vector<16xf32>
    %168 = arith.index_cast %99 : i32 to index
    %c80_42 = arith.constant 80 : index
    %169 = vector.load %arg3[%168, %c80_42] : memref<8x128xf32, #tpu.memory_space<vmem>>, vector<1x16xf32>
    %170 = vector.shape_cast %169 : vector<1x16xf32> to vector<16xf32>
    %171 = vector.shape_cast %167 : vector<16xf32> to vector<1x16xf32>
    tpu.vector_store %arg3[%168, %c80_42], %171 {strides = array<i32>} : memref<8x128xf32, #tpu.memory_space<vmem>>, vector<1x16xf32>,
    %c8_i32_43 = arith.constant 8 : i32
    %172 = arith.muli %99, %c8_i32_43 : i32
    %173 = arith.addi %0, %172 : i32
    %c6_i32_44 = arith.constant 6 : i32
    %174 = arith.addi %173, %c6_i32_44 : i32
    %175 = arith.index_cast %174 : i32 to index
    %176 = memref.load %arg1[%175] : memref<64xi32, #tpu.memory_space<smem>>
    %177 = arith.index_cast %176 : i32 to index
    %c0_45 = arith.constant 0 : index
    %178 = vector.load %arg2[%177, %c0_45] : memref<32x16xf32, #tpu.memory_space<vmem>>, vector<1x16xf32>
    %179 = vector.shape_cast %178 : vector<1x16xf32> to vector<16xf32>
    %180 = arith.index_cast %99 : i32 to index
    %c96_46 = arith.constant 96 : index
    %181 = vector.load %arg3[%180, %c96_46] : memref<8x128xf32, #tpu.memory_space<vmem>>, vector<1x16xf32>
    %182 = vector.shape_cast %181 : vector<1x16xf32> to vector<16xf32>
    %183 = vector.shape_cast %179 : vector<16xf32> to vector<1x16xf32>
    tpu.vector_store %arg3[%180, %c96_46], %183 {strides = array<i32>} : memref<8x128xf32, #tpu.memory_space<vmem>>, vector<1x16xf32>,
    %c8_i32_47 = arith.constant 8 : i32
    %184 = arith.muli %99, %c8_i32_47 : i32
    %185 = arith.addi %0, %184 : i32
    %c7_i32_48 = arith.constant 7 : i32
    %186 = arith.addi %185, %c7_i32_48 : i32
    %187 = arith.index_cast %186 : i32 to index
    %188 = memref.load %arg1[%187] : memref<64xi32, #tpu.memory_space<smem>>
    %189 = arith.index_cast %188 : i32 to index
    %c0_49 = arith.constant 0 : index
    %190 = vector.load %arg2[%189, %c0_49] : memref<32x16xf32, #tpu.memory_space<vmem>>, vector<1x16xf32>
    %191 = vector.shape_cast %190 : vector<1x16xf32> to vector<16xf32>
    %192 = arith.index_cast %99 : i32 to index
    %c112_50 = arith.constant 112 : index
    %193 = vector.load %arg3[%192, %c112_50] : memref<8x128xf32, #tpu.memory_space<vmem>>, vector<1x16xf32>
    %194 = vector.shape_cast %193 : vector<1x16xf32> to vector<16xf32>
    %195 = vector.shape_cast %191 : vector<16xf32> to vector<1x16xf32>
    tpu.vector_store %arg3[%192, %c112_50], %195 {strides = array<i32>} : memref<8x128xf32, #tpu.memory_space<vmem>>, vector<1x16xf32>,
    %c2_i32_51 = arith.constant 2 : i32
    %196 = arith.addi %1, %c2_i32_51 : i32
    %c8_i32_52 = arith.constant 8 : i32
    %197 = arith.muli %196, %c8_i32_52 : i32
    %198 = arith.addi %0, %197 : i32
    %c0_i32_53 = arith.constant 0 : i32
    %199 = arith.addi %198, %c0_i32_53 : i32
    %200 = arith.index_cast %199 : i32 to index
    %201 = memref.load %arg1[%200] : memref<64xi32, #tpu.memory_space<smem>>
    %202 = arith.index_cast %201 : i32 to index
    %c0_54 = arith.constant 0 : index
    %203 = vector.load %arg2[%202, %c0_54] : memref<32x16xf32, #tpu.memory_space<vmem>>, vector<1x16xf32>
    %204 = vector.shape_cast %203 : vector<1x16xf32> to vector<16xf32>
    %205 = arith.index_cast %196 : i32 to index
    %c0_55 = arith.constant 0 : index
    %206 = vector.load %arg3[%205, %c0_55] : memref<8x128xf32, #tpu.memory_space<vmem>>, vector<1x16xf32>
    %207 = vector.shape_cast %206 : vector<1x16xf32> to vector<16xf32>
    %208 = vector.shape_cast %204 : vector<16xf32> to vector<1x16xf32>
    tpu.vector_store %arg3[%205, %c0_55], %208 {strides = array<i32>} : memref<8x128xf32, #tpu.memory_space<vmem>>, vector<1x16xf32>,
    %c8_i32_56 = arith.constant 8 : i32
    %209 = arith.muli %196, %c8_i32_56 : i32
    %210 = arith.addi %0, %209 : i32
    %c1_i32_57 = arith.constant 1 : i32
    %211 = arith.addi %210, %c1_i32_57 : i32
    %212 = arith.index_cast %211 : i32 to index
    %213 = memref.load %arg1[%212] : memref<64xi32, #tpu.memory_space<smem>>
    %214 = arith.index_cast %213 : i32 to index
    %c0_58 = arith.constant 0 : index
    %215 = vector.load %arg2[%214, %c0_58] : memref<32x16xf32, #tpu.memory_space<vmem>>, vector<1x16xf32>
    %216 = vector.shape_cast %215 : vector<1x16xf32> to vector<16xf32>
    %217 = arith.index_cast %196 : i32 to index
    %c16_59 = arith.constant 16 : index
    %218 = vector.load %arg3[%217, %c16_59] : memref<8x128xf32, #tpu.memory_space<vmem>>, vector<1x16xf32>
    %219 = vector.shape_cast %218 : vector<1x16xf32> to vector<16xf32>
    %220 = vector.shape_cast %216 : vector<16xf32> to vector<1x16xf32>
    tpu.vector_store %arg3[%217, %c16_59], %220 {strides = array<i32>} : memref<8x128xf32, #tpu.memory_space<vmem>>, vector<1x16xf32>,
    %c8_i32_60 = arith.constant 8 : i32
    %221 = arith.muli %196, %c8_i32_60 : i32
    %222 = arith.addi %0, %221 : i32
    %c2_i32_61 = arith.constant 2 : i32
    %223 = arith.addi %222, %c2_i32_61 : i32
    %224 = arith.index_cast %223 : i32 to index
    %225 = memref.load %arg1[%224] : memref<64xi32, #tpu.memory_space<smem>>
    %226 = arith.index_cast %225 : i32 to index
    %c0_62 = arith.constant 0 : index
    %227 = vector.load %arg2[%226, %c0_62] : memref<32x16xf32, #tpu.memory_space<vmem>>, vector<1x16xf32>
    %228 = vector.shape_cast %227 : vector<1x16xf32> to vector<16xf32>
    %229 = arith.index_cast %196 : i32 to index
    %c32_63 = arith.constant 32 : index
    %230 = vector.load %arg3[%229, %c32_63] : memref<8x128xf32, #tpu.memory_space<vmem>>, vector<1x16xf32>
    %231 = vector.shape_cast %230 : vector<1x16xf32> to vector<16xf32>
    %232 = vector.shape_cast %228 : vector<16xf32> to vector<1x16xf32>
    tpu.vector_store %arg3[%229, %c32_63], %232 {strides = array<i32>} : memref<8x128xf32, #tpu.memory_space<vmem>>, vector<1x16xf32>,
    %c8_i32_64 = arith.constant 8 : i32
    %233 = arith.muli %196, %c8_i32_64 : i32
    %234 = arith.addi %0, %233 : i32
    %c3_i32_65 = arith.constant 3 : i32
    %235 = arith.addi %234, %c3_i32_65 : i32
    %236 = arith.index_cast %235 : i32 to index
    %237 = memref.load %arg1[%236] : memref<64xi32, #tpu.memory_space<smem>>
    %238 = arith.index_cast %237 : i32 to index
    %c0_66 = arith.constant 0 : index
    %239 = vector.load %arg2[%238, %c0_66] : memref<32x16xf32, #tpu.memory_space<vmem>>, vector<1x16xf32>
    %240 = vector.shape_cast %239 : vector<1x16xf32> to vector<16xf32>
    %241 = arith.index_cast %196 : i32 to index
    %c48_67 = arith.constant 48 : index
    %242 = vector.load %arg3[%241, %c48_67] : memref<8x128xf32, #tpu.memory_space<vmem>>, vector<1x16xf32>
    %243 = vector.shape_cast %242 : vector<1x16xf32> to vector<16xf32>
    %244 = vector.shape_cast %240 : vector<16xf32> to vector<1x16xf32>
    tpu.vector_store %arg3[%241, %c48_67], %244 {strides = array<i32>} : memref<8x128xf32, #tpu.memory_space<vmem>>, vector<1x16xf32>,
    %c8_i32_68 = arith.constant 8 : i32
    %245 = arith.muli %196, %c8_i32_68 : i32
    %246 = arith.addi %0, %245 : i32
    %c4_i32_69 = arith.constant 4 : i32
    %247 = arith.addi %246, %c4_i32_69 : i32
    %248 = arith.index_cast %247 : i32 to index
    %249 = memref.load %arg1[%248] : memref<64xi32, #tpu.memory_space<smem>>
    %250 = arith.index_cast %249 : i32 to index
    %c0_70 = arith.constant 0 : index
    %251 = vector.load %arg2[%250, %c0_70] : memref<32x16xf32, #tpu.memory_space<vmem>>, vector<1x16xf32>
    %252 = vector.shape_cast %251 : vector<1x16xf32> to vector<16xf32>
    %253 = arith.index_cast %196 : i32 to index
    %c64_71 = arith.constant 64 : index
    %254 = vector.load %arg3[%253, %c64_71] : memref<8x128xf32, #tpu.memory_space<vmem>>, vector<1x16xf32>
    %255 = vector.shape_cast %254 : vector<1x16xf32> to vector<16xf32>
    %256 = vector.shape_cast %252 : vector<16xf32> to vector<1x16xf32>
    tpu.vector_store %arg3[%253, %c64_71], %256 {strides = array<i32>} : memref<8x128xf32, #tpu.memory_space<vmem>>, vector<1x16xf32>,
    %c8_i32_72 = arith.constant 8 : i32
    %257 = arith.muli %196, %c8_i32_72 : i32
    %258 = arith.addi %0, %257 : i32
    %c5_i32_73 = arith.constant 5 : i32
    %259 = arith.addi %258, %c5_i32_73 : i32
    %260 = arith.index_cast %259 : i32 to index
    %261 = memref.load %arg1[%260] : memref<64xi32, #tpu.memory_space<smem>>
    %262 = arith.index_cast %261 : i32 to index
    %c0_74 = arith.constant 0 : index
    %263 = vector.load %arg2[%262, %c0_74] : memref<32x16xf32, #tpu.memory_space<vmem>>, vector<1x16xf32>
    %264 = vector.shape_cast %263 : vector<1x16xf32> to vector<16xf32>
    %265 = arith.index_cast %196 : i32 to index
    %c80_75 = arith.constant 80 : index
    %266 = vector.load %arg3[%265, %c80_75] : memref<8x128xf32, #tpu.memory_space<vmem>>, vector<1x16xf32>
    %267 = vector.shape_cast %266 : vector<1x16xf32> to vector<16xf32>
    %268 = vector.shape_cast %264 : vector<16xf32> to vector<1x16xf32>
    tpu.vector_store %arg3[%265, %c80_75], %268 {strides = array<i32>} : memref<8x128xf32, #tpu.memory_space<vmem>>, vector<1x16xf32>,
    %c8_i32_76 = arith.constant 8 : i32
    %269 = arith.muli %196, %c8_i32_76 : i32
    %270 = arith.addi %0, %269 : i32
    %c6_i32_77 = arith.constant 6 : i32
    %271 = arith.addi %270, %c6_i32_77 : i32
    %272 = arith.index_cast %271 : i32 to index
    %273 = memref.load %arg1[%272] : memref<64xi32, #tpu.memory_space<smem>>
    %274 = arith.index_cast %273 : i32 to index
    %c0_78 = arith.constant 0 : index
    %275 = vector.load %arg2[%274, %c0_78] : memref<32x16xf32, #tpu.memory_space<vmem>>, vector<1x16xf32>
    %276 = vector.shape_cast %275 : vector<1x16xf32> to vector<16xf32>
    %277 = arith.index_cast %196 : i32 to index
    %c96_79 = arith.constant 96 : index
    %278 = vector.load %arg3[%277, %c96_79] : memref<8x128xf32, #tpu.memory_space<vmem>>, vector<1x16xf32>
    %279 = vector.shape_cast %278 : vector<1x16xf32> to vector<16xf32>
    %280 = vector.shape_cast %276 : vector<16xf32> to vector<1x16xf32>
    tpu.vector_store %arg3[%277, %c96_79], %280 {strides = array<i32>} : memref<8x128xf32, #tpu.memory_space<vmem>>, vector<1x16xf32>,
    %c8_i32_80 = arith.constant 8 : i32
    %281 = arith.muli %196, %c8_i32_80 : i32
    %282 = arith.addi %0, %281 : i32
    %c7_i32_81 = arith.constant 7 : i32
    %283 = arith.addi %282, %c7_i32_81 : i32
    %284 = arith.index_cast %283 : i32 to index
    %285 = memref.load %arg1[%284] : memref<64xi32, #tpu.memory_space<smem>>
    %286 = arith.index_cast %285 : i32 to index
    %c0_82 = arith.constant 0 : index
    %287 = vector.load %arg2[%286, %c0_82] : memref<32x16xf32, #tpu.memory_space<vmem>>, vector<1x16xf32>
    %288 = vector.shape_cast %287 : vector<1x16xf32> to vector<16xf32>
    %289 = arith.index_cast %196 : i32 to index
    %c112_83 = arith.constant 112 : index
    %290 = vector.load %arg3[%289, %c112_83] : memref<8x128xf32, #tpu.memory_space<vmem>>, vector<1x16xf32>
    %291 = vector.shape_cast %290 : vector<1x16xf32> to vector<16xf32>
    %292 = vector.shape_cast %288 : vector<16xf32> to vector<1x16xf32>
    tpu.vector_store %arg3[%289, %c112_83], %292 {strides = array<i32>} : memref<8x128xf32, #tpu.memory_space<vmem>>, vector<1x16xf32>,
    %c3_i32_84 = arith.constant 3 : i32
    %293 = arith.addi %1, %c3_i32_84 : i32
    %c8_i32_85 = arith.constant 8 : i32
    %294 = arith.muli %293, %c8_i32_85 : i32
    %295 = arith.addi %0, %294 : i32
    %c0_i32_86 = arith.constant 0 : i32
    %296 = arith.addi %295, %c0_i32_86 : i32
    %297 = arith.index_cast %296 : i32 to index
    %298 = memref.load %arg1[%297] : memref<64xi32, #tpu.memory_space<smem>>
    %299 = arith.index_cast %298 : i32 to index
    %c0_87 = arith.constant 0 : index
    %300 = vector.load %arg2[%299, %c0_87] : memref<32x16xf32, #tpu.memory_space<vmem>>, vector<1x16xf32>
    %301 = vector.shape_cast %300 : vector<1x16xf32> to vector<16xf32>
    %302 = arith.index_cast %293 : i32 to index
    %c0_88 = arith.constant 0 : index
    %303 = vector.load %arg3[%302, %c0_88] : memref<8x128xf32, #tpu.memory_space<vmem>>, vector<1x16xf32>
    %304 = vector.shape_cast %303 : vector<1x16xf32> to vector<16xf32>
    %305 = vector.shape_cast %301 : vector<16xf32> to vector<1x16xf32>
    tpu.vector_store %arg3[%302, %c0_88], %305 {strides = array<i32>} : memref<8x128xf32, #tpu.memory_space<vmem>>, vector<1x16xf32>,
    %c8_i32_89 = arith.constant 8 : i32
    %306 = arith.muli %293, %c8_i32_89 : i32
    %307 = arith.addi %0, %306 : i32
    %c1_i32_90 = arith.constant 1 : i32
    %308 = arith.addi %307, %c1_i32_90 : i32
    %309 = arith.index_cast %308 : i32 to index
    %310 = memref.load %arg1[%309] : memref<64xi32, #tpu.memory_space<smem>>
    %311 = arith.index_cast %310 : i32 to index
    %c0_91 = arith.constant 0 : index
    %312 = vector.load %arg2[%311, %c0_91] : memref<32x16xf32, #tpu.memory_space<vmem>>, vector<1x16xf32>
    %313 = vector.shape_cast %312 : vector<1x16xf32> to vector<16xf32>
    %314 = arith.index_cast %293 : i32 to index
    %c16_92 = arith.constant 16 : index
    %315 = vector.load %arg3[%314, %c16_92] : memref<8x128xf32, #tpu.memory_space<vmem>>, vector<1x16xf32>
    %316 = vector.shape_cast %315 : vector<1x16xf32> to vector<16xf32>
    %317 = vector.shape_cast %313 : vector<16xf32> to vector<1x16xf32>
    tpu.vector_store %arg3[%314, %c16_92], %317 {strides = array<i32>} : memref<8x128xf32, #tpu.memory_space<vmem>>, vector<1x16xf32>,
    %c8_i32_93 = arith.constant 8 : i32
    %318 = arith.muli %293, %c8_i32_93 : i32
    %319 = arith.addi %0, %318 : i32
    %c2_i32_94 = arith.constant 2 : i32
    %320 = arith.addi %319, %c2_i32_94 : i32
    %321 = arith.index_cast %320 : i32 to index
    %322 = memref.load %arg1[%321] : memref<64xi32, #tpu.memory_space<smem>>
    %323 = arith.index_cast %322 : i32 to index
    %c0_95 = arith.constant 0 : index
    %324 = vector.load %arg2[%323, %c0_95] : memref<32x16xf32, #tpu.memory_space<vmem>>, vector<1x16xf32>
    %325 = vector.shape_cast %324 : vector<1x16xf32> to vector<16xf32>
    %326 = arith.index_cast %293 : i32 to index
    %c32_96 = arith.constant 32 : index
    %327 = vector.load %arg3[%326, %c32_96] : memref<8x128xf32, #tpu.memory_space<vmem>>, vector<1x16xf32>
    %328 = vector.shape_cast %327 : vector<1x16xf32> to vector<16xf32>
    %329 = vector.shape_cast %325 : vector<16xf32> to vector<1x16xf32>
    tpu.vector_store %arg3[%326, %c32_96], %329 {strides = array<i32>} : memref<8x128xf32, #tpu.memory_space<vmem>>, vector<1x16xf32>,
    %c8_i32_97 = arith.constant 8 : i32
    %330 = arith.muli %293, %c8_i32_97 : i32
    %331 = arith.addi %0, %330 : i32
    %c3_i32_98 = arith.constant 3 : i32
    %332 = arith.addi %331, %c3_i32_98 : i32
    %333 = arith.index_cast %332 : i32 to index
    %334 = memref.load %arg1[%333] : memref<64xi32, #tpu.memory_space<smem>>
    %335 = arith.index_cast %334 : i32 to index
    %c0_99 = arith.constant 0 : index
    %336 = vector.load %arg2[%335, %c0_99] : memref<32x16xf32, #tpu.memory_space<vmem>>, vector<1x16xf32>
    %337 = vector.shape_cast %336 : vector<1x16xf32> to vector<16xf32>
    %338 = arith.index_cast %293 : i32 to index
    %c48_100 = arith.constant 48 : index
    %339 = vector.load %arg3[%338, %c48_100] : memref<8x128xf32, #tpu.memory_space<vmem>>, vector<1x16xf32>
    %340 = vector.shape_cast %339 : vector<1x16xf32> to vector<16xf32>
    %341 = vector.shape_cast %337 : vector<16xf32> to vector<1x16xf32>
    tpu.vector_store %arg3[%338, %c48_100], %341 {strides = array<i32>} : memref<8x128xf32, #tpu.memory_space<vmem>>, vector<1x16xf32>,
    %c8_i32_101 = arith.constant 8 : i32
    %342 = arith.muli %293, %c8_i32_101 : i32
    %343 = arith.addi %0, %342 : i32
    %c4_i32_102 = arith.constant 4 : i32
    %344 = arith.addi %343, %c4_i32_102 : i32
    %345 = arith.index_cast %344 : i32 to index
    %346 = memref.load %arg1[%345] : memref<64xi32, #tpu.memory_space<smem>>
    %347 = arith.index_cast %346 : i32 to index
    %c0_103 = arith.constant 0 : index
    %348 = vector.load %arg2[%347, %c0_103] : memref<32x16xf32, #tpu.memory_space<vmem>>, vector<1x16xf32>
    %349 = vector.shape_cast %348 : vector<1x16xf32> to vector<16xf32>
    %350 = arith.index_cast %293 : i32 to index
    %c64_104 = arith.constant 64 : index
    %351 = vector.load %arg3[%350, %c64_104] : memref<8x128xf32, #tpu.memory_space<vmem>>, vector<1x16xf32>
    %352 = vector.shape_cast %351 : vector<1x16xf32> to vector<16xf32>
    %353 = vector.shape_cast %349 : vector<16xf32> to vector<1x16xf32>
    tpu.vector_store %arg3[%350, %c64_104], %353 {strides = array<i32>} : memref<8x128xf32, #tpu.memory_space<vmem>>, vector<1x16xf32>,
    %c8_i32_105 = arith.constant 8 : i32
    %354 = arith.muli %293, %c8_i32_105 : i32
    %355 = arith.addi %0, %354 : i32
    %c5_i32_106 = arith.constant 5 : i32
    %356 = arith.addi %355, %c5_i32_106 : i32
    %357 = arith.index_cast %356 : i32 to index
    %358 = memref.load %arg1[%357] : memref<64xi32, #tpu.memory_space<smem>>
    %359 = arith.index_cast %358 : i32 to index
    %c0_107 = arith.constant 0 : index
    %360 = vector.load %arg2[%359, %c0_107] : memref<32x16xf32, #tpu.memory_space<vmem>>, vector<1x16xf32>
    %361 = vector.shape_cast %360 : vector<1x16xf32> to vector<16xf32>
    %362 = arith.index_cast %293 : i32 to index
    %c80_108 = arith.constant 80 : index
    %363 = vector.load %arg3[%362, %c80_108] : memref<8x128xf32, #tpu.memory_space<vmem>>, vector<1x16xf32>
    %364 = vector.shape_cast %363 : vector<1x16xf32> to vector<16xf32>
    %365 = vector.shape_cast %361 : vector<16xf32> to vector<1x16xf32>
    tpu.vector_store %arg3[%362, %c80_108], %365 {strides = array<i32>} : memref<8x128xf32, #tpu.memory_space<vmem>>, vector<1x16xf32>,
    %c8_i32_109 = arith.constant 8 : i32
    %366 = arith.muli %293, %c8_i32_109 : i32
    %367 = arith.addi %0, %366 : i32
    %c6_i32_110 = arith.constant 6 : i32
    %368 = arith.addi %367, %c6_i32_110 : i32
    %369 = arith.index_cast %368 : i32 to index
    %370 = memref.load %arg1[%369] : memref<64xi32, #tpu.memory_space<smem>>
    %371 = arith.index_cast %370 : i32 to index
    %c0_111 = arith.constant 0 : index
    %372 = vector.load %arg2[%371, %c0_111] : memref<32x16xf32, #tpu.memory_space<vmem>>, vector<1x16xf32>
    %373 = vector.shape_cast %372 : vector<1x16xf32> to vector<16xf32>
    %374 = arith.index_cast %293 : i32 to index
    %c96_112 = arith.constant 96 : index
    %375 = vector.load %arg3[%374, %c96_112] : memref<8x128xf32, #tpu.memory_space<vmem>>, vector<1x16xf32>
    %376 = vector.shape_cast %375 : vector<1x16xf32> to vector<16xf32>
    %377 = vector.shape_cast %373 : vector<16xf32> to vector<1x16xf32>
    tpu.vector_store %arg3[%374, %c96_112], %377 {strides = array<i32>} : memref<8x128xf32, #tpu.memory_space<vmem>>, vector<1x16xf32>,
    %c8_i32_113 = arith.constant 8 : i32
    %378 = arith.muli %293, %c8_i32_113 : i32
    %379 = arith.addi %0, %378 : i32
    %c7_i32_114 = arith.constant 7 : i32
    %380 = arith.addi %379, %c7_i32_114 : i32
    %381 = arith.index_cast %380 : i32 to index
    %382 = memref.load %arg1[%381] : memref<64xi32, #tpu.memory_space<smem>>
    %383 = arith.index_cast %382 : i32 to index
    %c0_115 = arith.constant 0 : index
    %384 = vector.load %arg2[%383, %c0_115] : memref<32x16xf32, #tpu.memory_space<vmem>>, vector<1x16xf32>
    %385 = vector.shape_cast %384 : vector<1x16xf32> to vector<16xf32>
    %386 = arith.index_cast %293 : i32 to index
    %c112_116 = arith.constant 112 : index
    %387 = vector.load %arg3[%386, %c112_116] : memref<8x128xf32, #tpu.memory_space<vmem>>, vector<1x16xf32>
    %388 = vector.shape_cast %387 : vector<1x16xf32> to vector<16xf32>
    %389 = vector.shape_cast %385 : vector<16xf32> to vector<1x16xf32>
    tpu.vector_store %arg3[%386, %c112_116], %389 {strides = array<i32>} : memref<8x128xf32, #tpu.memory_space<vmem>>, vector<1x16xf32>,
    %c4_i32_117 = arith.constant 4 : i32
    %390 = arith.addi %1, %c4_i32_117 : i32
    %c8_i32_118 = arith.constant 8 : i32
    %391 = arith.muli %390, %c8_i32_118 : i32
    %392 = arith.addi %0, %391 : i32
    %c0_i32_119 = arith.constant 0 : i32
    %393 = arith.addi %392, %c0_i32_119 : i32
    %394 = arith.index_cast %393 : i32 to index
    %395 = memref.load %arg1[%394] : memref<64xi32, #tpu.memory_space<smem>>
    %396 = arith.index_cast %395 : i32 to index
    %c0_120 = arith.constant 0 : index
    %397 = vector.load %arg2[%396, %c0_120] : memref<32x16xf32, #tpu.memory_space<vmem>>, vector<1x16xf32>
    %398 = vector.shape_cast %397 : vector<1x16xf32> to vector<16xf32>
    %399 = arith.index_cast %390 : i32 to index
    %c0_121 = arith.constant 0 : index
    %400 = vector.load %arg3[%399, %c0_121] : memref<8x128xf32, #tpu.memory_space<vmem>>, vector<1x16xf32>
    %401 = vector.shape_cast %400 : vector<1x16xf32> to vector<16xf32>
    %402 = vector.shape_cast %398 : vector<16xf32> to vector<1x16xf32>
    tpu.vector_store %arg3[%399, %c0_121], %402 {strides = array<i32>} : memref<8x128xf32, #tpu.memory_space<vmem>>, vector<1x16xf32>,
    %c8_i32_122 = arith.constant 8 : i32
    %403 = arith.muli %390, %c8_i32_122 : i32
    %404 = arith.addi %0, %403 : i32
    %c1_i32_123 = arith.constant 1 : i32
    %405 = arith.addi %404, %c1_i32_123 : i32
    %406 = arith.index_cast %405 : i32 to index
    %407 = memref.load %arg1[%406] : memref<64xi32, #tpu.memory_space<smem>>
    %408 = arith.index_cast %407 : i32 to index
    %c0_124 = arith.constant 0 : index
    %409 = vector.load %arg2[%408, %c0_124] : memref<32x16xf32, #tpu.memory_space<vmem>>, vector<1x16xf32>
    %410 = vector.shape_cast %409 : vector<1x16xf32> to vector<16xf32>
    %411 = arith.index_cast %390 : i32 to index
    %c16_125 = arith.constant 16 : index
    %412 = vector.load %arg3[%411, %c16_125] : memref<8x128xf32, #tpu.memory_space<vmem>>, vector<1x16xf32>
    %413 = vector.shape_cast %412 : vector<1x16xf32> to vector<16xf32>
    %414 = vector.shape_cast %410 : vector<16xf32> to vector<1x16xf32>
    tpu.vector_store %arg3[%411, %c16_125], %414 {strides = array<i32>} : memref<8x128xf32, #tpu.memory_space<vmem>>, vector<1x16xf32>,
    %c8_i32_126 = arith.constant 8 : i32
    %415 = arith.muli %390, %c8_i32_126 : i32
    %416 = arith.addi %0, %415 : i32
    %c2_i32_127 = arith.constant 2 : i32
    %417 = arith.addi %416, %c2_i32_127 : i32
    %418 = arith.index_cast %417 : i32 to index
    %419 = memref.load %arg1[%418] : memref<64xi32, #tpu.memory_space<smem>>
    %420 = arith.index_cast %419 : i32 to index
    %c0_128 = arith.constant 0 : index
    %421 = vector.load %arg2[%420, %c0_128] : memref<32x16xf32, #tpu.memory_space<vmem>>, vector<1x16xf32>
    %422 = vector.shape_cast %421 : vector<1x16xf32> to vector<16xf32>
    %423 = arith.index_cast %390 : i32 to index
    %c32_129 = arith.constant 32 : index
    %424 = vector.load %arg3[%423, %c32_129] : memref<8x128xf32, #tpu.memory_space<vmem>>, vector<1x16xf32>
    %425 = vector.shape_cast %424 : vector<1x16xf32> to vector<16xf32>
    %426 = vector.shape_cast %422 : vector<16xf32> to vector<1x16xf32>
    tpu.vector_store %arg3[%423, %c32_129], %426 {strides = array<i32>} : memref<8x128xf32, #tpu.memory_space<vmem>>, vector<1x16xf32>,
    %c8_i32_130 = arith.constant 8 : i32
    %427 = arith.muli %390, %c8_i32_130 : i32
    %428 = arith.addi %0, %427 : i32
    %c3_i32_131 = arith.constant 3 : i32
    %429 = arith.addi %428, %c3_i32_131 : i32
    %430 = arith.index_cast %429 : i32 to index
    %431 = memref.load %arg1[%430] : memref<64xi32, #tpu.memory_space<smem>>
    %432 = arith.index_cast %431 : i32 to index
    %c0_132 = arith.constant 0 : index
    %433 = vector.load %arg2[%432, %c0_132] : memref<32x16xf32, #tpu.memory_space<vmem>>, vector<1x16xf32>
    %434 = vector.shape_cast %433 : vector<1x16xf32> to vector<16xf32>
    %435 = arith.index_cast %390 : i32 to index
    %c48_133 = arith.constant 48 : index
    %436 = vector.load %arg3[%435, %c48_133] : memref<8x128xf32, #tpu.memory_space<vmem>>, vector<1x16xf32>
    %437 = vector.shape_cast %436 : vector<1x16xf32> to vector<16xf32>
    %438 = vector.shape_cast %434 : vector<16xf32> to vector<1x16xf32>
    tpu.vector_store %arg3[%435, %c48_133], %438 {strides = array<i32>} : memref<8x128xf32, #tpu.memory_space<vmem>>, vector<1x16xf32>,
    %c8_i32_134 = arith.constant 8 : i32
    %439 = arith.muli %390, %c8_i32_134 : i32
    %440 = arith.addi %0, %439 : i32
    %c4_i32_135 = arith.constant 4 : i32
    %441 = arith.addi %440, %c4_i32_135 : i32
    %442 = arith.index_cast %441 : i32 to index
    %443 = memref.load %arg1[%442] : memref<64xi32, #tpu.memory_space<smem>>
    %444 = arith.index_cast %443 : i32 to index
    %c0_136 = arith.constant 0 : index
    %445 = vector.load %arg2[%444, %c0_136] : memref<32x16xf32, #tpu.memory_space<vmem>>, vector<1x16xf32>
    %446 = vector.shape_cast %445 : vector<1x16xf32> to vector<16xf32>
    %447 = arith.index_cast %390 : i32 to index
    %c64_137 = arith.constant 64 : index
    %448 = vector.load %arg3[%447, %c64_137] : memref<8x128xf32, #tpu.memory_space<vmem>>, vector<1x16xf32>
    %449 = vector.shape_cast %448 : vector<1x16xf32> to vector<16xf32>
    %450 = vector.shape_cast %446 : vector<16xf32> to vector<1x16xf32>
    tpu.vector_store %arg3[%447, %c64_137], %450 {strides = array<i32>} : memref<8x128xf32, #tpu.memory_space<vmem>>, vector<1x16xf32>,
    %c8_i32_138 = arith.constant 8 : i32
    %451 = arith.muli %390, %c8_i32_138 : i32
    %452 = arith.addi %0, %451 : i32
    %c5_i32_139 = arith.constant 5 : i32
    %453 = arith.addi %452, %c5_i32_139 : i32
    %454 = arith.index_cast %453 : i32 to index
    %455 = memref.load %arg1[%454] : memref<64xi32, #tpu.memory_space<smem>>
    %456 = arith.index_cast %455 : i32 to index
    %c0_140 = arith.constant 0 : index
    %457 = vector.load %arg2[%456, %c0_140] : memref<32x16xf32, #tpu.memory_space<vmem>>, vector<1x16xf32>
    %458 = vector.shape_cast %457 : vector<1x16xf32> to vector<16xf32>
    %459 = arith.index_cast %390 : i32 to index
    %c80_141 = arith.constant 80 : index
    %460 = vector.load %arg3[%459, %c80_141] : memref<8x128xf32, #tpu.memory_space<vmem>>, vector<1x16xf32>
    %461 = vector.shape_cast %460 : vector<1x16xf32> to vector<16xf32>
    %462 = vector.shape_cast %458 : vector<16xf32> to vector<1x16xf32>
    tpu.vector_store %arg3[%459, %c80_141], %462 {strides = array<i32>} : memref<8x128xf32, #tpu.memory_space<vmem>>, vector<1x16xf32>,
    %c8_i32_142 = arith.constant 8 : i32
    %463 = arith.muli %390, %c8_i32_142 : i32
    %464 = arith.addi %0, %463 : i32
    %c6_i32_143 = arith.constant 6 : i32
    %465 = arith.addi %464, %c6_i32_143 : i32
    %466 = arith.index_cast %465 : i32 to index
    %467 = memref.load %arg1[%466] : memref<64xi32, #tpu.memory_space<smem>>
    %468 = arith.index_cast %467 : i32 to index
    %c0_144 = arith.constant 0 : index
    %469 = vector.load %arg2[%468, %c0_144] : memref<32x16xf32, #tpu.memory_space<vmem>>, vector<1x16xf32>
    %470 = vector.shape_cast %469 : vector<1x16xf32> to vector<16xf32>
    %471 = arith.index_cast %390 : i32 to index
    %c96_145 = arith.constant 96 : index
    %472 = vector.load %arg3[%471, %c96_145] : memref<8x128xf32, #tpu.memory_space<vmem>>, vector<1x16xf32>
    %473 = vector.shape_cast %472 : vector<1x16xf32> to vector<16xf32>
    %474 = vector.shape_cast %470 : vector<16xf32> to vector<1x16xf32>
    tpu.vector_store %arg3[%471, %c96_145], %474 {strides = array<i32>} : memref<8x128xf32, #tpu.memory_space<vmem>>, vector<1x16xf32>,
    %c8_i32_146 = arith.constant 8 : i32
    %475 = arith.muli %390, %c8_i32_146 : i32
    %476 = arith.addi %0, %475 : i32
    %c7_i32_147 = arith.constant 7 : i32
    %477 = arith.addi %476, %c7_i32_147 : i32
    %478 = arith.index_cast %477 : i32 to index
    %479 = memref.load %arg1[%478] : memref<64xi32, #tpu.memory_space<smem>>
    %480 = arith.index_cast %479 : i32 to index
    %c0_148 = arith.constant 0 : index
    %481 = vector.load %arg2[%480, %c0_148] : memref<32x16xf32, #tpu.memory_space<vmem>>, vector<1x16xf32>
    %482 = vector.shape_cast %481 : vector<1x16xf32> to vector<16xf32>
    %483 = arith.index_cast %390 : i32 to index
    %c112_149 = arith.constant 112 : index
    %484 = vector.load %arg3[%483, %c112_149] : memref<8x128xf32, #tpu.memory_space<vmem>>, vector<1x16xf32>
    %485 = vector.shape_cast %484 : vector<1x16xf32> to vector<16xf32>
    %486 = vector.shape_cast %482 : vector<16xf32> to vector<1x16xf32>
    tpu.vector_store %arg3[%483, %c112_149], %486 {strides = array<i32>} : memref<8x128xf32, #tpu.memory_space<vmem>>, vector<1x16xf32>,
    %c5_i32_150 = arith.constant 5 : i32
    %487 = arith.addi %1, %c5_i32_150 : i32
    %c8_i32_151 = arith.constant 8 : i32
    %488 = arith.muli %487, %c8_i32_151 : i32
    %489 = arith.addi %0, %488 : i32
    %c0_i32_152 = arith.constant 0 : i32
    %490 = arith.addi %489, %c0_i32_152 : i32
    %491 = arith.index_cast %490 : i32 to index
    %492 = memref.load %arg1[%491] : memref<64xi32, #tpu.memory_space<smem>>
    %493 = arith.index_cast %492 : i32 to index
    %c0_153 = arith.constant 0 : index
    %494 = vector.load %arg2[%493, %c0_153] : memref<32x16xf32, #tpu.memory_space<vmem>>, vector<1x16xf32>
    %495 = vector.shape_cast %494 : vector<1x16xf32> to vector<16xf32>
    %496 = arith.index_cast %487 : i32 to index
    %c0_154 = arith.constant 0 : index
    %497 = vector.load %arg3[%496, %c0_154] : memref<8x128xf32, #tpu.memory_space<vmem>>, vector<1x16xf32>
    %498 = vector.shape_cast %497 : vector<1x16xf32> to vector<16xf32>
    %499 = vector.shape_cast %495 : vector<16xf32> to vector<1x16xf32>
    tpu.vector_store %arg3[%496, %c0_154], %499 {strides = array<i32>} : memref<8x128xf32, #tpu.memory_space<vmem>>, vector<1x16xf32>,
    %c8_i32_155 = arith.constant 8 : i32
    %500 = arith.muli %487, %c8_i32_155 : i32
    %501 = arith.addi %0, %500 : i32
    %c1_i32_156 = arith.constant 1 : i32
    %502 = arith.addi %501, %c1_i32_156 : i32
    %503 = arith.index_cast %502 : i32 to index
    %504 = memref.load %arg1[%503] : memref<64xi32, #tpu.memory_space<smem>>
    %505 = arith.index_cast %504 : i32 to index
    %c0_157 = arith.constant 0 : index
    %506 = vector.load %arg2[%505, %c0_157] : memref<32x16xf32, #tpu.memory_space<vmem>>, vector<1x16xf32>
    %507 = vector.shape_cast %506 : vector<1x16xf32> to vector<16xf32>
    %508 = arith.index_cast %487 : i32 to index
    %c16_158 = arith.constant 16 : index
    %509 = vector.load %arg3[%508, %c16_158] : memref<8x128xf32, #tpu.memory_space<vmem>>, vector<1x16xf32>
    %510 = vector.shape_cast %509 : vector<1x16xf32> to vector<16xf32>
    %511 = vector.shape_cast %507 : vector<16xf32> to vector<1x16xf32>
    tpu.vector_store %arg3[%508, %c16_158], %511 {strides = array<i32>} : memref<8x128xf32, #tpu.memory_space<vmem>>, vector<1x16xf32>,
    %c8_i32_159 = arith.constant 8 : i32
    %512 = arith.muli %487, %c8_i32_159 : i32
    %513 = arith.addi %0, %512 : i32
    %c2_i32_160 = arith.constant 2 : i32
    %514 = arith.addi %513, %c2_i32_160 : i32
    %515 = arith.index_cast %514 : i32 to index
    %516 = memref.load %arg1[%515] : memref<64xi32, #tpu.memory_space<smem>>
    %517 = arith.index_cast %516 : i32 to index
    %c0_161 = arith.constant 0 : index
    %518 = vector.load %arg2[%517, %c0_161] : memref<32x16xf32, #tpu.memory_space<vmem>>, vector<1x16xf32>
    %519 = vector.shape_cast %518 : vector<1x16xf32> to vector<16xf32>
    %520 = arith.index_cast %487 : i32 to index
    %c32_162 = arith.constant 32 : index
    %521 = vector.load %arg3[%520, %c32_162] : memref<8x128xf32, #tpu.memory_space<vmem>>, vector<1x16xf32>
    %522 = vector.shape_cast %521 : vector<1x16xf32> to vector<16xf32>
    %523 = vector.shape_cast %519 : vector<16xf32> to vector<1x16xf32>
    tpu.vector_store %arg3[%520, %c32_162], %523 {strides = array<i32>} : memref<8x128xf32, #tpu.memory_space<vmem>>, vector<1x16xf32>,
    %c8_i32_163 = arith.constant 8 : i32
    %524 = arith.muli %487, %c8_i32_163 : i32
    %525 = arith.addi %0, %524 : i32
    %c3_i32_164 = arith.constant 3 : i32
    %526 = arith.addi %525, %c3_i32_164 : i32
    %527 = arith.index_cast %526 : i32 to index
    %528 = memref.load %arg1[%527] : memref<64xi32, #tpu.memory_space<smem>>
    %529 = arith.index_cast %528 : i32 to index
    %c0_165 = arith.constant 0 : index
    %530 = vector.load %arg2[%529, %c0_165] : memref<32x16xf32, #tpu.memory_space<vmem>>, vector<1x16xf32>
    %531 = vector.shape_cast %530 : vector<1x16xf32> to vector<16xf32>
    %532 = arith.index_cast %487 : i32 to index
    %c48_166 = arith.constant 48 : index
    %533 = vector.load %arg3[%532, %c48_166] : memref<8x128xf32, #tpu.memory_space<vmem>>, vector<1x16xf32>
    %534 = vector.shape_cast %533 : vector<1x16xf32> to vector<16xf32>
    %535 = vector.shape_cast %531 : vector<16xf32> to vector<1x16xf32>
    tpu.vector_store %arg3[%532, %c48_166], %535 {strides = array<i32>} : memref<8x128xf32, #tpu.memory_space<vmem>>, vector<1x16xf32>,
    %c8_i32_167 = arith.constant 8 : i32
    %536 = arith.muli %487, %c8_i32_167 : i32
    %537 = arith.addi %0, %536 : i32
    %c4_i32_168 = arith.constant 4 : i32
    %538 = arith.addi %537, %c4_i32_168 : i32
    %539 = arith.index_cast %538 : i32 to index
    %540 = memref.load %arg1[%539] : memref<64xi32, #tpu.memory_space<smem>>
    %541 = arith.index_cast %540 : i32 to index
    %c0_169 = arith.constant 0 : index
    %542 = vector.load %arg2[%541, %c0_169] : memref<32x16xf32, #tpu.memory_space<vmem>>, vector<1x16xf32>
    %543 = vector.shape_cast %542 : vector<1x16xf32> to vector<16xf32>
    %544 = arith.index_cast %487 : i32 to index
    %c64_170 = arith.constant 64 : index
    %545 = vector.load %arg3[%544, %c64_170] : memref<8x128xf32, #tpu.memory_space<vmem>>, vector<1x16xf32>
    %546 = vector.shape_cast %545 : vector<1x16xf32> to vector<16xf32>
    %547 = vector.shape_cast %543 : vector<16xf32> to vector<1x16xf32>
    tpu.vector_store %arg3[%544, %c64_170], %547 {strides = array<i32>} : memref<8x128xf32, #tpu.memory_space<vmem>>, vector<1x16xf32>,
    %c8_i32_171 = arith.constant 8 : i32
    %548 = arith.muli %487, %c8_i32_171 : i32
    %549 = arith.addi %0, %548 : i32
    %c5_i32_172 = arith.constant 5 : i32
    %550 = arith.addi %549, %c5_i32_172 : i32
    %551 = arith.index_cast %550 : i32 to index
    %552 = memref.load %arg1[%551] : memref<64xi32, #tpu.memory_space<smem>>
    %553 = arith.index_cast %552 : i32 to index
    %c0_173 = arith.constant 0 : index
    %554 = vector.load %arg2[%553, %c0_173] : memref<32x16xf32, #tpu.memory_space<vmem>>, vector<1x16xf32>
    %555 = vector.shape_cast %554 : vector<1x16xf32> to vector<16xf32>
    %556 = arith.index_cast %487 : i32 to index
    %c80_174 = arith.constant 80 : index
    %557 = vector.load %arg3[%556, %c80_174] : memref<8x128xf32, #tpu.memory_space<vmem>>, vector<1x16xf32>
    %558 = vector.shape_cast %557 : vector<1x16xf32> to vector<16xf32>
    %559 = vector.shape_cast %555 : vector<16xf32> to vector<1x16xf32>
    tpu.vector_store %arg3[%556, %c80_174], %559 {strides = array<i32>} : memref<8x128xf32, #tpu.memory_space<vmem>>, vector<1x16xf32>,
    %c8_i32_175 = arith.constant 8 : i32
    %560 = arith.muli %487, %c8_i32_175 : i32
    %561 = arith.addi %0, %560 : i32
    %c6_i32_176 = arith.constant 6 : i32
    %562 = arith.addi %561, %c6_i32_176 : i32
    %563 = arith.index_cast %562 : i32 to index
    %564 = memref.load %arg1[%563] : memref<64xi32, #tpu.memory_space<smem>>
    %565 = arith.index_cast %564 : i32 to index
    %c0_177 = arith.constant 0 : index
    %566 = vector.load %arg2[%565, %c0_177] : memref<32x16xf32, #tpu.memory_space<vmem>>, vector<1x16xf32>
    %567 = vector.shape_cast %566 : vector<1x16xf32> to vector<16xf32>
    %568 = arith.index_cast %487 : i32 to index
    %c96_178 = arith.constant 96 : index
    %569 = vector.load %arg3[%568, %c96_178] : memref<8x128xf32, #tpu.memory_space<vmem>>, vector<1x16xf32>
    %570 = vector.shape_cast %569 : vector<1x16xf32> to vector<16xf32>
    %571 = vector.shape_cast %567 : vector<16xf32> to vector<1x16xf32>
    tpu.vector_store %arg3[%568, %c96_178], %571 {strides = array<i32>} : memref<8x128xf32, #tpu.memory_space<vmem>>, vector<1x16xf32>,
    %c8_i32_179 = arith.constant 8 : i32
    %572 = arith.muli %487, %c8_i32_179 : i32
    %573 = arith.addi %0, %572 : i32
    %c7_i32_180 = arith.constant 7 : i32
    %574 = arith.addi %573, %c7_i32_180 : i32
    %575 = arith.index_cast %574 : i32 to index
    %576 = memref.load %arg1[%575] : memref<64xi32, #tpu.memory_space<smem>>
    %577 = arith.index_cast %576 : i32 to index
    %c0_181 = arith.constant 0 : index
    %578 = vector.load %arg2[%577, %c0_181] : memref<32x16xf32, #tpu.memory_space<vmem>>, vector<1x16xf32>
    %579 = vector.shape_cast %578 : vector<1x16xf32> to vector<16xf32>
    %580 = arith.index_cast %487 : i32 to index
    %c112_182 = arith.constant 112 : index
    %581 = vector.load %arg3[%580, %c112_182] : memref<8x128xf32, #tpu.memory_space<vmem>>, vector<1x16xf32>
    %582 = vector.shape_cast %581 : vector<1x16xf32> to vector<16xf32>
    %583 = vector.shape_cast %579 : vector<16xf32> to vector<1x16xf32>
    tpu.vector_store %arg3[%580, %c112_182], %583 {strides = array<i32>} : memref<8x128xf32, #tpu.memory_space<vmem>>, vector<1x16xf32>,
    %c6_i32_183 = arith.constant 6 : i32
    %584 = arith.addi %1, %c6_i32_183 : i32
    %c8_i32_184 = arith.constant 8 : i32
    %585 = arith.muli %584, %c8_i32_184 : i32
    %586 = arith.addi %0, %585 : i32
    %c0_i32_185 = arith.constant 0 : i32
    %587 = arith.addi %586, %c0_i32_185 : i32
    %588 = arith.index_cast %587 : i32 to index
    %589 = memref.load %arg1[%588] : memref<64xi32, #tpu.memory_space<smem>>
    %590 = arith.index_cast %589 : i32 to index
    %c0_186 = arith.constant 0 : index
    %591 = vector.load %arg2[%590, %c0_186] : memref<32x16xf32, #tpu.memory_space<vmem>>, vector<1x16xf32>
    %592 = vector.shape_cast %591 : vector<1x16xf32> to vector<16xf32>
    %593 = arith.index_cast %584 : i32 to index
    %c0_187 = arith.constant 0 : index
    %594 = vector.load %arg3[%593, %c0_187] : memref<8x128xf32, #tpu.memory_space<vmem>>, vector<1x16xf32>
    %595 = vector.shape_cast %594 : vector<1x16xf32> to vector<16xf32>
    %596 = vector.shape_cast %592 : vector<16xf32> to vector<1x16xf32>
    tpu.vector_store %arg3[%593, %c0_187], %596 {strides = array<i32>} : memref<8x128xf32, #tpu.memory_space<vmem>>, vector<1x16xf32>,
    %c8_i32_188 = arith.constant 8 : i32
    %597 = arith.muli %584, %c8_i32_188 : i32
    %598 = arith.addi %0, %597 : i32
    %c1_i32_189 = arith.constant 1 : i32
    %599 = arith.addi %598, %c1_i32_189 : i32
    %600 = arith.index_cast %599 : i32 to index
    %601 = memref.load %arg1[%600] : memref<64xi32, #tpu.memory_space<smem>>
    %602 = arith.index_cast %601 : i32 to index
    %c0_190 = arith.constant 0 : index
    %603 = vector.load %arg2[%602, %c0_190] : memref<32x16xf32, #tpu.memory_space<vmem>>, vector<1x16xf32>
    %604 = vector.shape_cast %603 : vector<1x16xf32> to vector<16xf32>
    %605 = arith.index_cast %584 : i32 to index
    %c16_191 = arith.constant 16 : index
    %606 = vector.load %arg3[%605, %c16_191] : memref<8x128xf32, #tpu.memory_space<vmem>>, vector<1x16xf32>
    %607 = vector.shape_cast %606 : vector<1x16xf32> to vector<16xf32>
    %608 = vector.shape_cast %604 : vector<16xf32> to vector<1x16xf32>
    tpu.vector_store %arg3[%605, %c16_191], %608 {strides = array<i32>} : memref<8x128xf32, #tpu.memory_space<vmem>>, vector<1x16xf32>,
    %c8_i32_192 = arith.constant 8 : i32
    %609 = arith.muli %584, %c8_i32_192 : i32
    %610 = arith.addi %0, %609 : i32
    %c2_i32_193 = arith.constant 2 : i32
    %611 = arith.addi %610, %c2_i32_193 : i32
    %612 = arith.index_cast %611 : i32 to index
    %613 = memref.load %arg1[%612] : memref<64xi32, #tpu.memory_space<smem>>
    %614 = arith.index_cast %613 : i32 to index
    %c0_194 = arith.constant 0 : index
    %615 = vector.load %arg2[%614, %c0_194] : memref<32x16xf32, #tpu.memory_space<vmem>>, vector<1x16xf32>
    %616 = vector.shape_cast %615 : vector<1x16xf32> to vector<16xf32>
    %617 = arith.index_cast %584 : i32 to index
    %c32_195 = arith.constant 32 : index
    %618 = vector.load %arg3[%617, %c32_195] : memref<8x128xf32, #tpu.memory_space<vmem>>, vector<1x16xf32>
    %619 = vector.shape_cast %618 : vector<1x16xf32> to vector<16xf32>
    %620 = vector.shape_cast %616 : vector<16xf32> to vector<1x16xf32>
    tpu.vector_store %arg3[%617, %c32_195], %620 {strides = array<i32>} : memref<8x128xf32, #tpu.memory_space<vmem>>, vector<1x16xf32>,
    %c8_i32_196 = arith.constant 8 : i32
    %621 = arith.muli %584, %c8_i32_196 : i32
    %622 = arith.addi %0, %621 : i32
    %c3_i32_197 = arith.constant 3 : i32
    %623 = arith.addi %622, %c3_i32_197 : i32
    %624 = arith.index_cast %623 : i32 to index
    %625 = memref.load %arg1[%624] : memref<64xi32, #tpu.memory_space<smem>>
    %626 = arith.index_cast %625 : i32 to index
    %c0_198 = arith.constant 0 : index
    %627 = vector.load %arg2[%626, %c0_198] : memref<32x16xf32, #tpu.memory_space<vmem>>, vector<1x16xf32>
    %628 = vector.shape_cast %627 : vector<1x16xf32> to vector<16xf32>
    %629 = arith.index_cast %584 : i32 to index
    %c48_199 = arith.constant 48 : index
    %630 = vector.load %arg3[%629, %c48_199] : memref<8x128xf32, #tpu.memory_space<vmem>>, vector<1x16xf32>
    %631 = vector.shape_cast %630 : vector<1x16xf32> to vector<16xf32>
    %632 = vector.shape_cast %628 : vector<16xf32> to vector<1x16xf32>
    tpu.vector_store %arg3[%629, %c48_199], %632 {strides = array<i32>} : memref<8x128xf32, #tpu.memory_space<vmem>>, vector<1x16xf32>,
    %c8_i32_200 = arith.constant 8 : i32
    %633 = arith.muli %584, %c8_i32_200 : i32
    %634 = arith.addi %0, %633 : i32
    %c4_i32_201 = arith.constant 4 : i32
    %635 = arith.addi %634, %c4_i32_201 : i32
    %636 = arith.index_cast %635 : i32 to index
    %637 = memref.load %arg1[%636] : memref<64xi32, #tpu.memory_space<smem>>
    %638 = arith.index_cast %637 : i32 to index
    %c0_202 = arith.constant 0 : index
    %639 = vector.load %arg2[%638, %c0_202] : memref<32x16xf32, #tpu.memory_space<vmem>>, vector<1x16xf32>
    %640 = vector.shape_cast %639 : vector<1x16xf32> to vector<16xf32>
    %641 = arith.index_cast %584 : i32 to index
    %c64_203 = arith.constant 64 : index
    %642 = vector.load %arg3[%641, %c64_203] : memref<8x128xf32, #tpu.memory_space<vmem>>, vector<1x16xf32>
    %643 = vector.shape_cast %642 : vector<1x16xf32> to vector<16xf32>
    %644 = vector.shape_cast %640 : vector<16xf32> to vector<1x16xf32>
    tpu.vector_store %arg3[%641, %c64_203], %644 {strides = array<i32>} : memref<8x128xf32, #tpu.memory_space<vmem>>, vector<1x16xf32>,
    %c8_i32_204 = arith.constant 8 : i32
    %645 = arith.muli %584, %c8_i32_204 : i32
    %646 = arith.addi %0, %645 : i32
    %c5_i32_205 = arith.constant 5 : i32
    %647 = arith.addi %646, %c5_i32_205 : i32
    %648 = arith.index_cast %647 : i32 to index
    %649 = memref.load %arg1[%648] : memref<64xi32, #tpu.memory_space<smem>>
    %650 = arith.index_cast %649 : i32 to index
    %c0_206 = arith.constant 0 : index
    %651 = vector.load %arg2[%650, %c0_206] : memref<32x16xf32, #tpu.memory_space<vmem>>, vector<1x16xf32>
    %652 = vector.shape_cast %651 : vector<1x16xf32> to vector<16xf32>
    %653 = arith.index_cast %584 : i32 to index
    %c80_207 = arith.constant 80 : index
    %654 = vector.load %arg3[%653, %c80_207] : memref<8x128xf32, #tpu.memory_space<vmem>>, vector<1x16xf32>
    %655 = vector.shape_cast %654 : vector<1x16xf32> to vector<16xf32>
    %656 = vector.shape_cast %652 : vector<16xf32> to vector<1x16xf32>
    tpu.vector_store %arg3[%653, %c80_207], %656 {strides = array<i32>} : memref<8x128xf32, #tpu.memory_space<vmem>>, vector<1x16xf32>,
    %c8_i32_208 = arith.constant 8 : i32
    %657 = arith.muli %584, %c8_i32_208 : i32
    %658 = arith.addi %0, %657 : i32
    %c6_i32_209 = arith.constant 6 : i32
    %659 = arith.addi %658, %c6_i32_209 : i32
    %660 = arith.index_cast %659 : i32 to index
    %661 = memref.load %arg1[%660] : memref<64xi32, #tpu.memory_space<smem>>
    %662 = arith.index_cast %661 : i32 to index
    %c0_210 = arith.constant 0 : index
    %663 = vector.load %arg2[%662, %c0_210] : memref<32x16xf32, #tpu.memory_space<vmem>>, vector<1x16xf32>
    %664 = vector.shape_cast %663 : vector<1x16xf32> to vector<16xf32>
    %665 = arith.index_cast %584 : i32 to index
    %c96_211 = arith.constant 96 : index
    %666 = vector.load %arg3[%665, %c96_211] : memref<8x128xf32, #tpu.memory_space<vmem>>, vector<1x16xf32>
    %667 = vector.shape_cast %666 : vector<1x16xf32> to vector<16xf32>
    %668 = vector.shape_cast %664 : vector<16xf32> to vector<1x16xf32>
    tpu.vector_store %arg3[%665, %c96_211], %668 {strides = array<i32>} : memref<8x128xf32, #tpu.memory_space<vmem>>, vector<1x16xf32>,
    %c8_i32_212 = arith.constant 8 : i32
    %669 = arith.muli %584, %c8_i32_212 : i32
    %670 = arith.addi %0, %669 : i32
    %c7_i32_213 = arith.constant 7 : i32
    %671 = arith.addi %670, %c7_i32_213 : i32
    %672 = arith.index_cast %671 : i32 to index
    %673 = memref.load %arg1[%672] : memref<64xi32, #tpu.memory_space<smem>>
    %674 = arith.index_cast %673 : i32 to index
    %c0_214 = arith.constant 0 : index
    %675 = vector.load %arg2[%674, %c0_214] : memref<32x16xf32, #tpu.memory_space<vmem>>, vector<1x16xf32>
    %676 = vector.shape_cast %675 : vector<1x16xf32> to vector<16xf32>
    %677 = arith.index_cast %584 : i32 to index
    %c112_215 = arith.constant 112 : index
    %678 = vector.load %arg3[%677, %c112_215] : memref<8x128xf32, #tpu.memory_space<vmem>>, vector<1x16xf32>
    %679 = vector.shape_cast %678 : vector<1x16xf32> to vector<16xf32>
    %680 = vector.shape_cast %676 : vector<16xf32> to vector<1x16xf32>
    tpu.vector_store %arg3[%677, %c112_215], %680 {strides = array<i32>} : memref<8x128xf32, #tpu.memory_space<vmem>>, vector<1x16xf32>,
    %c7_i32_216 = arith.constant 7 : i32
    %681 = arith.addi %1, %c7_i32_216 : i32
    %c8_i32_217 = arith.constant 8 : i32
    %682 = arith.muli %681, %c8_i32_217 : i32
    %683 = arith.addi %0, %682 : i32
    %c0_i32_218 = arith.constant 0 : i32
    %684 = arith.addi %683, %c0_i32_218 : i32
    %685 = arith.index_cast %684 : i32 to index
    %686 = memref.load %arg1[%685] : memref<64xi32, #tpu.memory_space<smem>>
    %687 = arith.index_cast %686 : i32 to index
    %c0_219 = arith.constant 0 : index
    %688 = vector.load %arg2[%687, %c0_219] : memref<32x16xf32, #tpu.memory_space<vmem>>, vector<1x16xf32>
    %689 = vector.shape_cast %688 : vector<1x16xf32> to vector<16xf32>
    %690 = arith.index_cast %681 : i32 to index
    %c0_220 = arith.constant 0 : index
    %691 = vector.load %arg3[%690, %c0_220] : memref<8x128xf32, #tpu.memory_space<vmem>>, vector<1x16xf32>
    %692 = vector.shape_cast %691 : vector<1x16xf32> to vector<16xf32>
    %693 = vector.shape_cast %689 : vector<16xf32> to vector<1x16xf32>
    tpu.vector_store %arg3[%690, %c0_220], %693 {strides = array<i32>} : memref<8x128xf32, #tpu.memory_space<vmem>>, vector<1x16xf32>,
    %c8_i32_221 = arith.constant 8 : i32
    %694 = arith.muli %681, %c8_i32_221 : i32
    %695 = arith.addi %0, %694 : i32
    %c1_i32_222 = arith.constant 1 : i32
    %696 = arith.addi %695, %c1_i32_222 : i32
    %697 = arith.index_cast %696 : i32 to index
    %698 = memref.load %arg1[%697] : memref<64xi32, #tpu.memory_space<smem>>
    %699 = arith.index_cast %698 : i32 to index
    %c0_223 = arith.constant 0 : index
    %700 = vector.load %arg2[%699, %c0_223] : memref<32x16xf32, #tpu.memory_space<vmem>>, vector<1x16xf32>
    %701 = vector.shape_cast %700 : vector<1x16xf32> to vector<16xf32>
    %702 = arith.index_cast %681 : i32 to index
    %c16_224 = arith.constant 16 : index
    %703 = vector.load %arg3[%702, %c16_224] : memref<8x128xf32, #tpu.memory_space<vmem>>, vector<1x16xf32>
    %704 = vector.shape_cast %703 : vector<1x16xf32> to vector<16xf32>
    %705 = vector.shape_cast %701 : vector<16xf32> to vector<1x16xf32>
    tpu.vector_store %arg3[%702, %c16_224], %705 {strides = array<i32>} : memref<8x128xf32, #tpu.memory_space<vmem>>, vector<1x16xf32>,
    %c8_i32_225 = arith.constant 8 : i32
    %706 = arith.muli %681, %c8_i32_225 : i32
    %707 = arith.addi %0, %706 : i32
    %c2_i32_226 = arith.constant 2 : i32
    %708 = arith.addi %707, %c2_i32_226 : i32
    %709 = arith.index_cast %708 : i32 to index
    %710 = memref.load %arg1[%709] : memref<64xi32, #tpu.memory_space<smem>>
    %711 = arith.index_cast %710 : i32 to index
    %c0_227 = arith.constant 0 : index
    %712 = vector.load %arg2[%711, %c0_227] : memref<32x16xf32, #tpu.memory_space<vmem>>, vector<1x16xf32>
    %713 = vector.shape_cast %712 : vector<1x16xf32> to vector<16xf32>
    %714 = arith.index_cast %681 : i32 to index
    %c32_228 = arith.constant 32 : index
    %715 = vector.load %arg3[%714, %c32_228] : memref<8x128xf32, #tpu.memory_space<vmem>>, vector<1x16xf32>
    %716 = vector.shape_cast %715 : vector<1x16xf32> to vector<16xf32>
    %717 = vector.shape_cast %713 : vector<16xf32> to vector<1x16xf32>
    tpu.vector_store %arg3[%714, %c32_228], %717 {strides = array<i32>} : memref<8x128xf32, #tpu.memory_space<vmem>>, vector<1x16xf32>,
    %c8_i32_229 = arith.constant 8 : i32
    %718 = arith.muli %681, %c8_i32_229 : i32
    %719 = arith.addi %0, %718 : i32
    %c3_i32_230 = arith.constant 3 : i32
    %720 = arith.addi %719, %c3_i32_230 : i32
    %721 = arith.index_cast %720 : i32 to index
    %722 = memref.load %arg1[%721] : memref<64xi32, #tpu.memory_space<smem>>
    %723 = arith.index_cast %722 : i32 to index
    %c0_231 = arith.constant 0 : index
    %724 = vector.load %arg2[%723, %c0_231] : memref<32x16xf32, #tpu.memory_space<vmem>>, vector<1x16xf32>
    %725 = vector.shape_cast %724 : vector<1x16xf32> to vector<16xf32>
    %726 = arith.index_cast %681 : i32 to index
    %c48_232 = arith.constant 48 : index
    %727 = vector.load %arg3[%726, %c48_232] : memref<8x128xf32, #tpu.memory_space<vmem>>, vector<1x16xf32>
    %728 = vector.shape_cast %727 : vector<1x16xf32> to vector<16xf32>
    %729 = vector.shape_cast %725 : vector<16xf32> to vector<1x16xf32>
    tpu.vector_store %arg3[%726, %c48_232], %729 {strides = array<i32>} : memref<8x128xf32, #tpu.memory_space<vmem>>, vector<1x16xf32>,
    %c8_i32_233 = arith.constant 8 : i32
    %730 = arith.muli %681, %c8_i32_233 : i32
    %731 = arith.addi %0, %730 : i32
    %c4_i32_234 = arith.constant 4 : i32
    %732 = arith.addi %731, %c4_i32_234 : i32
    %733 = arith.index_cast %732 : i32 to index
    %734 = memref.load %arg1[%733] : memref<64xi32, #tpu.memory_space<smem>>
    %735 = arith.index_cast %734 : i32 to index
    %c0_235 = arith.constant 0 : index
    %736 = vector.load %arg2[%735, %c0_235] : memref<32x16xf32, #tpu.memory_space<vmem>>, vector<1x16xf32>
    %737 = vector.shape_cast %736 : vector<1x16xf32> to vector<16xf32>
    %738 = arith.index_cast %681 : i32 to index
    %c64_236 = arith.constant 64 : index
    %739 = vector.load %arg3[%738, %c64_236] : memref<8x128xf32, #tpu.memory_space<vmem>>, vector<1x16xf32>
    %740 = vector.shape_cast %739 : vector<1x16xf32> to vector<16xf32>
    %741 = vector.shape_cast %737 : vector<16xf32> to vector<1x16xf32>
    tpu.vector_store %arg3[%738, %c64_236], %741 {strides = array<i32>} : memref<8x128xf32, #tpu.memory_space<vmem>>, vector<1x16xf32>,
    %c8_i32_237 = arith.constant 8 : i32
    %742 = arith.muli %681, %c8_i32_237 : i32
    %743 = arith.addi %0, %742 : i32
    %c5_i32_238 = arith.constant 5 : i32
    %744 = arith.addi %743, %c5_i32_238 : i32
    %745 = arith.index_cast %744 : i32 to index
    %746 = memref.load %arg1[%745] : memref<64xi32, #tpu.memory_space<smem>>
    %747 = arith.index_cast %746 : i32 to index
    %c0_239 = arith.constant 0 : index
    %748 = vector.load %arg2[%747, %c0_239] : memref<32x16xf32, #tpu.memory_space<vmem>>, vector<1x16xf32>
    %749 = vector.shape_cast %748 : vector<1x16xf32> to vector<16xf32>
    %750 = arith.index_cast %681 : i32 to index
    %c80_240 = arith.constant 80 : index
    %751 = vector.load %arg3[%750, %c80_240] : memref<8x128xf32, #tpu.memory_space<vmem>>, vector<1x16xf32>
    %752 = vector.shape_cast %751 : vector<1x16xf32> to vector<16xf32>
    %753 = vector.shape_cast %749 : vector<16xf32> to vector<1x16xf32>
    tpu.vector_store %arg3[%750, %c80_240], %753 {strides = array<i32>} : memref<8x128xf32, #tpu.memory_space<vmem>>, vector<1x16xf32>,
    %c8_i32_241 = arith.constant 8 : i32
    %754 = arith.muli %681, %c8_i32_241 : i32
    %755 = arith.addi %0, %754 : i32
    %c6_i32_242 = arith.constant 6 : i32
    %756 = arith.addi %755, %c6_i32_242 : i32
    %757 = arith.index_cast %756 : i32 to index
    %758 = memref.load %arg1[%757] : memref<64xi32, #tpu.memory_space<smem>>
    %759 = arith.index_cast %758 : i32 to index
    %c0_243 = arith.constant 0 : index
    %760 = vector.load %arg2[%759, %c0_243] : memref<32x16xf32, #tpu.memory_space<vmem>>, vector<1x16xf32>
    %761 = vector.shape_cast %760 : vector<1x16xf32> to vector<16xf32>
    %762 = arith.index_cast %681 : i32 to index
    %c96_244 = arith.constant 96 : index
    %763 = vector.load %arg3[%762, %c96_244] : memref<8x128xf32, #tpu.memory_space<vmem>>, vector<1x16xf32>
    %764 = vector.shape_cast %763 : vector<1x16xf32> to vector<16xf32>
    %765 = vector.shape_cast %761 : vector<16xf32> to vector<1x16xf32>
    tpu.vector_store %arg3[%762, %c96_244], %765 {strides = array<i32>} : memref<8x128xf32, #tpu.memory_space<vmem>>, vector<1x16xf32>,
    %c8_i32_245 = arith.constant 8 : i32
    %766 = arith.muli %681, %c8_i32_245 : i32
    %767 = arith.addi %0, %766 : i32
    %c7_i32_246 = arith.constant 7 : i32
    %768 = arith.addi %767, %c7_i32_246 : i32
    %769 = arith.index_cast %768 : i32 to index
    %770 = memref.load %arg1[%769] : memref<64xi32, #tpu.memory_space<smem>>
    %771 = arith.index_cast %770 : i32 to index
    %c0_247 = arith.constant 0 : index
    %772 = vector.load %arg2[%771, %c0_247] : memref<32x16xf32, #tpu.memory_space<vmem>>, vector<1x16xf32>
    %773 = vector.shape_cast %772 : vector<1x16xf32> to vector<16xf32>
    %774 = arith.index_cast %681 : i32 to index
    %c112_248 = arith.constant 112 : index
    %775 = vector.load %arg3[%774, %c112_248] : memref<8x128xf32, #tpu.memory_space<vmem>>, vector<1x16xf32>
    %776 = vector.shape_cast %775 : vector<1x16xf32> to vector<16xf32>
    %777 = vector.shape_cast %773 : vector<16xf32> to vector<1x16xf32>
    tpu.vector_store %arg3[%774, %c112_248], %777 {strides = array<i32>} : memref<8x128xf32, #tpu.memory_space<vmem>>, vector<1x16xf32>,
    %c1_i32_249 = arith.constant 1 : i32
    return
  }
  func.func @transform_0(%arg0: i32, %arg1: memref<64xi32, #tpu.memory_space<smem>>) -> (i32, i32) {
    %c0_i32 = arith.constant 0 : i32
    %c0_i32_0 = arith.constant 0 : i32
    %c0_i32_1 = arith.constant 0 : i32
    return %c0_i32, %c0_i32_0 : i32, i32
  }
  func.func @transform_1(%arg0: i32, %arg1: memref<64xi32, #tpu.memory_space<smem>>) -> (i32, i32) {
    %c0_i32 = arith.constant 0 : i32
    %c0_i32_0 = arith.constant 0 : i32
    return %arg0, %c0_i32 : i32, i32
  }
}

</mosaic_0001>

<llo_original>
// kernel: tpu_custom_call.1
$region0: #{tpu_custom_call.1}
  #allocation0 [shape = 'u32[]', space=smem, size = 0x4, offset = 0x4, fixed_abs, tag = 'smem constant byte address 0x4 - core index']
  #allocation1 [shape = 'u32[144,128]{1,0:T(1,128)}', space=vmem, size = 0x12000, scoped, tag = 'internal scratch']
  #allocation2 [shape = 's32[1]{0}', space=sflag, size = 0x4, scoped, tag = 'scoped memory for tpu_custom_call.1']
  #allocation3 [shape = 'u8[512]{0}', space=smem, size = 0x200, scoped, tag = 'prefetched SMEM operand 0']
  %s0 = inlined_call_operand.vmem [shape: s32[64], index: 0, kind: input, shape index: {}]
  %s1 = inlined_call_operand.vmem [shape: f32[32,16], index: 1, kind: input, shape index: {}]
  %s2 = inlined_call_operand.hbm [shape: f32[8,128], index: 2, kind: output, shape index: {}]
  %s3 = sld [smem:[#allocation0]]
  $region14: #{tpu_custom_call.1} parent=0
    _
  %s5 = ssub.s32 1, %s3
  %s6 = scalar_select 0, %s5, %s3
  %s7 = sshll.u32 %s0, 4
  %s8 = int_to_ptr.vmem [resolvable:$true] %s7
  %10 = dma.vmem_to_smem %s8, 16, [#allocation3], [#allocation2]
  %11 = dma.done [#allocation2], 16
  %12 = sfence
  $region1: #{tpu_custom_call.1} parent=0
    #allocation4 [shape = 'u8[4096]{0}', space=vmem, size = 0x1000, scoped, tag = 'output window, operand 0, single buffered']
    #allocation5 [shape = 's32[1]{0}', space=sflag, size = 0x4, scoped, tag = 'scoped memory for tpu_custom_call.1']
    %13 = vsyncpa [#allocation5], 0
    // Predicated region
    $region2: #{tpu_custom_call.1} parent=1 // pred_check
      _
    $region3: #{tpu_custom_call.1} parent=1 // pred_check_branch
      %15 = sbr.rel (0) target = $region5
    $region4: #{tpu_custom_call.1} parent=1 // pred_region
      _
    $region5: #{tpu_custom_call.1} parent=1 // pred_fallthru
      _
    %s16 = smul.u32 0, 64
    %s17 = sld [smem:[#allocation3 + %s16]]
    %s18 = scalar_lea.vmem %s1, %s17
    %v19 = vld [vmem:[%s18] sm:$0x1]
    %vm20 = vcmask 122880
    %21 = vst.msk [vmem:[#allocation4] sm:$0x1] %vm20, %v19
    %s22 = sadd.s32 %s16, 1
    %s23 = sld [smem:[#allocation3 + %s22]]
    %s24 = scalar_lea.vmem %s1, %s23
    %v25 = vld [vmem:[%s24] sm:$0x1]
    %27 = vrot.lane.b32.xlu0 %v25, 16
    %v28 = vpop.permute.xlu0 %27
    %vm30 = vcmask 254080
    %31 = vst.msk [vmem:[#allocation4] sm:$0x1] %vm30, %v28
    %s32 = sadd.s32 %s16, 2
    %s33 = sld [smem:[#allocation3 + %s32]]
    %s34 = scalar_lea.vmem %s1, %s33
    %v35 = vld [vmem:[%s34] sm:$0x1]
    %37 = vrot.lane.b32.xlu0 %v35, 32
    %v38 = vpop.permute.xlu0 %37
    %vm40 = vcmask 385280
    %41 = vst.msk [vmem:[#allocation4] sm:$0x1] %vm40, %v38
    %s42 = sadd.s32 %s16, 3
    %s43 = sld [smem:[#allocation3 + %s42]]
    %s44 = scalar_lea.vmem %s1, %s43
    %v45 = vld [vmem:[%s44] sm:$0x1]
    %47 = vrot.lane.b32.xlu0 %v45, 48
    %v48 = vpop.permute.xlu0 %47
    %vm50 = vcmask 516480
    %51 = vst.msk [vmem:[#allocation4] sm:$0x1] %vm50, %v48
    %s52 = sadd.s32 %s16, 4
    %s53 = sld [smem:[#allocation3 + %s52]]
    %s54 = scalar_lea.vmem %s1, %s53
    %v55 = vld [vmem:[%s54] sm:$0x1]
    %57 = vrot.lane.b32.xlu0 %v55, 64
    %v58 = vpop.permute.xlu0 %57
    %vm60 = vcmask 647680
    %61 = vst.msk [vmem:[#allocation4] sm:$0x1] %vm60, %v58
    %s62 = sadd.s32 %s16, 5
    %s63 = sld [smem:[#allocation3 + %s62]]
    %s64 = scalar_lea.vmem %s1, %s63
    %v65 = vld [vmem:[%s64] sm:$0x1]
    %67 = vrot.lane.b32.xlu0 %v65, 80
    %v68 = vpop.permute.xlu0 %67
    %vm70 = vcmask 778880
    %71 = vst.msk [vmem:[#allocation4] sm:$0x1] %vm70, %v68
    %s72 = sadd.s32 %s16, 6
    %s73 = sld [smem:[#allocation3 + %s72]]
    %s74 = scalar_lea.vmem %s1, %s73
    %v75 = vld [vmem:[%s74] sm:$0x1]
    %77 = vrot.lane.b32.xlu0 %v75, 96
    %v78 = vpop.permute.xlu0 %77
    %vm80 = vcmask 910080
    %81 = vst.msk [vmem:[#allocation4] sm:$0x1] %vm80, %v78
    %s82 = sadd.s32 %s16, 7
    %s83 = sld [smem:[#allocation3 + %s82]]
    %s84 = scalar_lea.vmem %s1, %s83
    %v85 = vld [vmem:[%s84] sm:$0x1]
    %87 = vrot.lane.b32.xlu0 %v85, 112
    %v88 = vpop.permute.xlu0 %87
    %vm90 = vcmask 1041280
    %91 = vst.msk [vmem:[#allocation4] sm:$0x1] %vm90, %v88
    %s92 = sadd.s32 %s16, 8
    %s93 = sld [smem:[#allocation3 + %s92]]
    %s94 = scalar_lea.vmem %s1, %s93
    %v95 = vld [vmem:[%s94] sm:$0x1]
    %96 = vst.msk [vmem:[#allocation4 + $0x1] sm:$0x1] %vm20, %v95
    %s97 = sadd.s32 %s16, 9
    %s98 = sld [smem:[#allocation3 + %s97]]
    %s99 = scalar_lea.vmem %s1, %s98
    %v100 = vld [vmem:[%s99] sm:$0x1]
    %102 = vrot.lane.b32.xlu0 %v100, 16
    %v103 = vpop.permute.xlu0 %102
    %105 = vst.msk [vmem:[#allocation4 + $0x1] sm:$0x1] %vm30, %v103
    %s106 = sadd.s32 %s16, 10
    %s107 = sld [smem:[#allocation3 + %s106]]
    %s108 = scalar_lea.vmem %s1, %s107
    %v109 = vld [vmem:[%s108] sm:$0x1]
    %111 = vrot.lane.b32.xlu0 %v109, 32
    %v112 = vpop.permute.xlu0 %111
    %114 = vst.msk [vmem:[#allocation4 + $0x1] sm:$0x1] %vm40, %v112
    %s115 = sadd.s32 %s16, 11
    %s116 = sld [smem:[#allocation3 + %s115]]
    %s117 = scalar_lea.vmem %s1, %s116
    %v118 = vld [vmem:[%s117] sm:$0x1]
    %120 = vrot.lane.b32.xlu0 %v118, 48
    %v121 = vpop.permute.xlu0 %120
    %123 = vst.msk [vmem:[#allocation4 + $0x1] sm:$0x1] %vm50, %v121
    %s124 = sadd.s32 %s16, 12
    %s125 = sld [smem:[#allocation3 + %s124]]
    %s126 = scalar_lea.vmem %s1, %s125
    %v127 = vld [vmem:[%s126] sm:$0x1]
    %129 = vrot.lane.b32.xlu0 %v127, 64
    %v130 = vpop.permute.xlu0 %129
    %132 = vst.msk [vmem:[#allocation4 + $0x1] sm:$0x1] %vm60, %v130
    %s133 = sadd.s32 %s16, 13
    %s134 = sld [smem:[#allocation3 + %s133]]
    %s135 = scalar_lea.vmem %s1, %s134
    %v136 = vld [vmem:[%s135] sm:$0x1]
    %138 = vrot.lane.b32.xlu0 %v136, 80
    %v139 = vpop.permute.xlu0 %138
    %141 = vst.msk [vmem:[#allocation4 + $0x1] sm:$0x1] %vm70, %v139
    %s142 = sadd.s32 %s16, 14
    %s143 = sld [smem:[#allocation3 + %s142]]
    %s144 = scalar_lea.vmem %s1, %s143
    %v145 = vld [vmem:[%s144] sm:$0x1]
    %147 = vrot.lane.b32.xlu0 %v145, 96
    %v148 = vpop.permute.xlu0 %147
    %150 = vst.msk [vmem:[#allocation4 + $0x1] sm:$0x1] %vm80, %v148
    %s151 = sadd.s32 %s16, 15
    %s152 = sld [smem:[#allocation3 + %s151]]
    %s153 = scalar_lea.vmem %s1, %s152
    %v154 = vld [vmem:[%s153] sm:$0x1]
    %156 = vrot.lane.b32.xlu0 %v154, 112
    %v157 = vpop.permute.xlu0 %156
    %159 = vst.msk [vmem:[#allocation4 + $0x1] sm:$0x1] %vm90, %v157
    %s160 = sadd.s32 %s16, 16
    %s161 = sld [smem:[#allocation3 + %s160]]
    %s162 = scalar_lea.vmem %s1, %s161
    %v163 = vld [vmem:[%s162] sm:$0x1]
    %164 = vst.msk [vmem:[#allocation4 + $0x2] sm:$0x1] %vm20, %v163
    %s165 = sadd.s32 %s16, 17
    %s166 = sld [smem:[#allocation3 + %s165]]
    %s167 = scalar_lea.vmem %s1, %s166
    %v168 = vld [vmem:[%s167] sm:$0x1]
    %170 = vrot.lane.b32.xlu0 %v168, 16
    %v171 = vpop.permute.xlu0 %170
    %173 = vst.msk [vmem:[#allocation4 + $0x2] sm:$0x1] %vm30, %v171
    %s174 = sadd.s32 %s16, 18
    %s175 = sld [smem:[#allocation3 + %s174]]
    %s176 = scalar_lea.vmem %s1, %s175
    %v177 = vld [vmem:[%s176] sm:$0x1]
    %179 = vrot.lane.b32.xlu0 %v177, 32
    %v180 = vpop.permute.xlu0 %179
    %182 = vst.msk [vmem:[#allocation4 + $0x2] sm:$0x1] %vm40, %v180
    %s183 = sadd.s32 %s16, 19
    %s184 = sld [smem:[#allocation3 + %s183]]
    %s185 = scalar_lea.vmem %s1, %s184
    %v186 = vld [vmem:[%s185] sm:$0x1]
    %188 = vrot.lane.b32.xlu0 %v186, 48
    %v189 = vpop.permute.xlu0 %188
    %191 = vst.msk [vmem:[#allocation4 + $0x2] sm:$0x1] %vm50, %v189
    %s192 = sadd.s32 %s16, 20
    %s193 = sld [smem:[#allocation3 + %s192]]
    %s194 = scalar_lea.vmem %s1, %s193
    %v195 = vld [vmem:[%s194] sm:$0x1]
    %197 = vrot.lane.b32.xlu0 %v195, 64
    %v198 = vpop.permute.xlu0 %197
    %200 = vst.msk [vmem:[#allocation4 + $0x2] sm:$0x1] %vm60, %v198
    %s201 = sadd.s32 %s16, 21
    %s202 = sld [smem:[#allocation3 + %s201]]
    %s203 = scalar_lea.vmem %s1, %s202
    %v204 = vld [vmem:[%s203] sm:$0x1]
    %206 = vrot.lane.b32.xlu0 %v204, 80
    %v207 = vpop.permute.xlu0 %206
    %209 = vst.msk [vmem:[#allocation4 + $0x2] sm:$0x1] %vm70, %v207
    %s210 = sadd.s32 %s16, 22
    %s211 = sld [smem:[#allocation3 + %s210]]
    %s212 = scalar_lea.vmem %s1, %s211
    %v213 = vld [vmem:[%s212] sm:$0x1]
    %215 = vrot.lane.b32.xlu0 %v213, 96
    %v216 = vpop.permute.xlu0 %215
    %218 = vst.msk [vmem:[#allocation4 + $0x2] sm:$0x1] %vm80, %v216
    %s219 = sadd.s32 %s16, 23
    %s220 = sld [smem:[#allocation3 + %s219]]
    %s221 = scalar_lea.vmem %s1, %s220
    %v222 = vld [vmem:[%s221] sm:$0x1]
    %224 = vrot.lane.b32.xlu0 %v222, 112
    %v225 = vpop.permute.xlu0 %224
    %227 = vst.msk [vmem:[#allocation4 + $0x2] sm:$0x1] %vm90, %v225
    %s228 = sadd.s32 %s16, 24
    %s229 = sld [smem:[#allocation3 + %s228]]
    %s230 = scalar_lea.vmem %s1, %s229
    %v231 = vld [vmem:[%s230] sm:$0x1]
    %232 = vst.msk [vmem:[#allocation4 + $0x3] sm:$0x1] %vm20, %v231
    %s233 = sadd.s32 %s16, 25
    %s234 = sld [smem:[#allocation3 + %s233]]
    %s235 = scalar_lea.vmem %s1, %s234
    %v236 = vld [vmem:[%s235] sm:$0x1]
    %238 = vrot.lane.b32.xlu0 %v236, 16
    %v239 = vpop.permute.xlu0 %238
    %241 = vst.msk [vmem:[#allocation4 + $0x3] sm:$0x1] %vm30, %v239
    %s242 = sadd.s32 %s16, 26
    %s243 = sld [smem:[#allocation3 + %s242]]
    %s244 = scalar_lea.vmem %s1, %s243
    %v245 = vld [vmem:[%s244] sm:$0x1]
    %247 = vrot.lane.b32.xlu0 %v245, 32
    %v248 = vpop.permute.xlu0 %247
    %250 = vst.msk [vmem:[#allocation4 + $0x3] sm:$0x1] %vm40, %v248
    %s251 = sadd.s32 %s16, 27
    %s252 = sld [smem:[#allocation3 + %s251]]
    %s253 = scalar_lea.vmem %s1, %s252
    %v254 = vld [vmem:[%s253] sm:$0x1]
    %256 = vrot.lane.b32.xlu0 %v254, 48
    %v257 = vpop.permute.xlu0 %256
    %259 = vst.msk [vmem:[#allocation4 + $0x3] sm:$0x1] %vm50, %v257
    %s260 = sadd.s32 %s16, 28
    %s261 = sld [smem:[#allocation3 + %s260]]
    %s262 = scalar_lea.vmem %s1, %s261
    %v263 = vld [vmem:[%s262] sm:$0x1]
    %265 = vrot.lane.b32.xlu0 %v263, 64
    %v266 = vpop.permute.xlu0 %265
    %268 = vst.msk [vmem:[#allocation4 + $0x3] sm:$0x1] %vm60, %v266
    %s269 = sadd.s32 %s16, 29
    %s270 = sld [smem:[#allocation3 + %s269]]
    %s271 = scalar_lea.vmem %s1, %s270
    %v272 = vld [vmem:[%s271] sm:$0x1]
    %274 = vrot.lane.b32.xlu0 %v272, 80
    %v275 = vpop.permute.xlu0 %274
    %277 = vst.msk [vmem:[#allocation4 + $0x3] sm:$0x1] %vm70, %v275
    %s278 = sadd.s32 %s16, 30
    %s279 = sld [smem:[#allocation3 + %s278]]
    %s280 = scalar_lea.vmem %s1, %s279
    %v281 = vld [vmem:[%s280] sm:$0x1]
    %283 = vrot.lane.b32.xlu0 %v281, 96
    %v284 = vpop.permute.xlu0 %283
    %286 = vst.msk [vmem:[#allocation4 + $0x3] sm:$0x1] %vm80, %v284
    %s287 = sadd.s32 %s16, 31
    %s288 = sld [smem:[#allocation3 + %s287]]
    %s289 = scalar_lea.vmem %s1, %s288
    %v290 = vld [vmem:[%s289] sm:$0x1]
    %292 = vrot.lane.b32.xlu0 %v290, 112
    %v293 = vpop.permute.xlu0 %292
    %295 = vst.msk [vmem:[#allocation4 + $0x3] sm:$0x1] %vm90, %v293
    %s296 = sadd.s32 %s16, 32
    %s297 = sld [smem:[#allocation3 + %s296]]
    %s298 = scalar_lea.vmem %s1, %s297
    %v299 = vld [vmem:[%s298] sm:$0x1]
    %300 = vst.msk [vmem:[#allocation4 + $0x4] sm:$0x1] %vm20, %v299
    %s301 = sadd.s32 %s16, 33
    %s302 = sld [smem:[#allocation3 + %s301]]
    %s303 = scalar_lea.vmem %s1, %s302
    %v304 = vld [vmem:[%s303] sm:$0x1]
    %306 = vrot.lane.b32.xlu0 %v304, 16
    %v307 = vpop.permute.xlu0 %306
    %309 = vst.msk [vmem:[#allocation4 + $0x4] sm:$0x1] %vm30, %v307
    %s310 = sadd.s32 %s16, 34
    %s311 = sld [smem:[#allocation3 + %s310]]
    %s312 = scalar_lea.vmem %s1, %s311
    %v313 = vld [vmem:[%s312] sm:$0x1]
    %315 = vrot.lane.b32.xlu0 %v313, 32
    %v316 = vpop.permute.xlu0 %315
    %318 = vst.msk [vmem:[#allocation4 + $0x4] sm:$0x1] %vm40, %v316
    %s319 = sadd.s32 %s16, 35
    %s320 = sld [smem:[#allocation3 + %s319]]
    %s321 = scalar_lea.vmem %s1, %s320
    %v322 = vld [vmem:[%s321] sm:$0x1]
    %324 = vrot.lane.b32.xlu0 %v322, 48
    %v325 = vpop.permute.xlu0 %324
    %327 = vst.msk [vmem:[#allocation4 + $0x4] sm:$0x1] %vm50, %v325
    %s328 = sadd.s32 %s16, 36
    %s329 = sld [smem:[#allocation3 + %s328]]
    %s330 = scalar_lea.vmem %s1, %s329
    %v331 = vld [vmem:[%s330] sm:$0x1]
    %333 = vrot.lane.b32.xlu0 %v331, 64
    %v334 = vpop.permute.xlu0 %333
    %336 = vst.msk [vmem:[#allocation4 + $0x4] sm:$0x1] %vm60, %v334
    %s337 = sadd.s32 %s16, 37
    %s338 = sld [smem:[#allocation3 + %s337]]
    %s339 = scalar_lea.vmem %s1, %s338
    %v340 = vld [vmem:[%s339] sm:$0x1]
    %342 = vrot.lane.b32.xlu0 %v340, 80
    %v343 = vpop.permute.xlu0 %342
    %345 = vst.msk [vmem:[#allocation4 + $0x4] sm:$0x1] %vm70, %v343
    %s346 = sadd.s32 %s16, 38
    %s347 = sld [smem:[#allocation3 + %s346]]
    %s348 = scalar_lea.vmem %s1, %s347
    %v349 = vld [vmem:[%s348] sm:$0x1]
    %351 = vrot.lane.b32.xlu0 %v349, 96
    %v352 = vpop.permute.xlu0 %351
    %354 = vst.msk [vmem:[#allocation4 + $0x4] sm:$0x1] %vm80, %v352
    %s355 = sadd.s32 %s16, 39
    %s356 = sld [smem:[#allocation3 + %s355]]
    %s357 = scalar_lea.vmem %s1, %s356
    %v358 = vld [vmem:[%s357] sm:$0x1]
    %360 = vrot.lane.b32.xlu0 %v358, 112
    %v361 = vpop.permute.xlu0 %360
    %363 = vst.msk [vmem:[#allocation4 + $0x4] sm:$0x1] %vm90, %v361
    %s364 = sadd.s32 %s16, 40
    %s365 = sld [smem:[#allocation3 + %s364]]
    %s366 = scalar_lea.vmem %s1, %s365
    %v367 = vld [vmem:[%s366] sm:$0x1]
    %368 = vst.msk [vmem:[#allocation4 + $0x5] sm:$0x1] %vm20, %v367
    %s369 = sadd.s32 %s16, 41
    %s370 = sld [smem:[#allocation3 + %s369]]
    %s371 = scalar_lea.vmem %s1, %s370
    %v372 = vld [vmem:[%s371] sm:$0x1]
    %374 = vrot.lane.b32.xlu0 %v372, 16
    %v375 = vpop.permute.xlu0 %374
    %377 = vst.msk [vmem:[#allocation4 + $0x5] sm:$0x1] %vm30, %v375
    %s378 = sadd.s32 %s16, 42
    %s379 = sld [smem:[#allocation3 + %s378]]
    %s380 = scalar_lea.vmem %s1, %s379
    %v381 = vld [vmem:[%s380] sm:$0x1]
    %383 = vrot.lane.b32.xlu0 %v381, 32
    %v384 = vpop.permute.xlu0 %383
    %386 = vst.msk [vmem:[#allocation4 + $0x5] sm:$0x1] %vm40, %v384
    %s387 = sadd.s32 %s16, 43
    %s388 = sld [smem:[#allocation3 + %s387]]
    %s389 = scalar_lea.vmem %s1, %s388
    %v390 = vld [vmem:[%s389] sm:$0x1]
    %392 = vrot.lane.b32.xlu0 %v390, 48
    %v393 = vpop.permute.xlu0 %392
    %395 = vst.msk [vmem:[#allocation4 + $0x5] sm:$0x1] %vm50, %v393
    %s396 = sadd.s32 %s16, 44
    %s397 = sld [smem:[#allocation3 + %s396]]
    %s398 = scalar_lea.vmem %s1, %s397
    %v399 = vld [vmem:[%s398] sm:$0x1]
    %401 = vrot.lane.b32.xlu0 %v399, 64
    %v402 = vpop.permute.xlu0 %401
    %404 = vst.msk [vmem:[#allocation4 + $0x5] sm:$0x1] %vm60, %v402
    %s405 = sadd.s32 %s16, 45
    %s406 = sld [smem:[#allocation3 + %s405]]
    %s407 = scalar_lea.vmem %s1, %s406
    %v408 = vld [vmem:[%s407] sm:$0x1]
    %410 = vrot.lane.b32.xlu0 %v408, 80
    %v411 = vpop.permute.xlu0 %410
    %413 = vst.msk [vmem:[#allocation4 + $0x5] sm:$0x1] %vm70, %v411
    %s414 = sadd.s32 %s16, 46
    %s415 = sld [smem:[#allocation3 + %s414]]
    %s416 = scalar_lea.vmem %s1, %s415
    %v417 = vld [vmem:[%s416] sm:$0x1]
    %419 = vrot.lane.b32.xlu0 %v417, 96
    %v420 = vpop.permute.xlu0 %419
    %422 = vst.msk [vmem:[#allocation4 + $0x5] sm:$0x1] %vm80, %v420
    %s423 = sadd.s32 %s16, 47
    %s424 = sld [smem:[#allocation3 + %s423]]
    %s425 = scalar_lea.vmem %s1, %s424
    %v426 = vld [vmem:[%s425] sm:$0x1]
    %428 = vrot.lane.b32.xlu0 %v426, 112
    %v429 = vpop.permute.xlu0 %428
    %431 = vst.msk [vmem:[#allocation4 + $0x5] sm:$0x1] %vm90, %v429
    %s432 = sadd.s32 %s16, 48
    %s433 = sld [smem:[#allocation3 + %s432]]
    %s434 = scalar_lea.vmem %s1, %s433
    %v435 = vld [vmem:[%s434] sm:$0x1]
    %436 = vst.msk [vmem:[#allocation4 + $0x6] sm:$0x1] %vm20, %v435
    %s437 = sadd.s32 %s16, 49
    %s438 = sld [smem:[#allocation3 + %s437]]
    %s439 = scalar_lea.vmem %s1, %s438
    %v440 = vld [vmem:[%s439] sm:$0x1]
    %442 = vrot.lane.b32.xlu0 %v440, 16
    %v443 = vpop.permute.xlu0 %442
    %445 = vst.msk [vmem:[#allocation4 + $0x6] sm:$0x1] %vm30, %v443
    %s446 = sadd.s32 %s16, 50
    %s447 = sld [smem:[#allocation3 + %s446]]
    %s448 = scalar_lea.vmem %s1, %s447
    %v449 = vld [vmem:[%s448] sm:$0x1]
    %451 = vrot.lane.b32.xlu0 %v449, 32
    %v452 = vpop.permute.xlu0 %451
    %454 = vst.msk [vmem:[#allocation4 + $0x6] sm:$0x1] %vm40, %v452
    %s455 = sadd.s32 %s16, 51
    %s456 = sld [smem:[#allocation3 + %s455]]
    %s457 = scalar_lea.vmem %s1, %s456
    %v458 = vld [vmem:[%s457] sm:$0x1]
    %460 = vrot.lane.b32.xlu0 %v458, 48
    %v461 = vpop.permute.xlu0 %460
    %463 = vst.msk [vmem:[#allocation4 + $0x6] sm:$0x1] %vm50, %v461
    %s464 = sadd.s32 %s16, 52
    %s465 = sld [smem:[#allocation3 + %s464]]
    %s466 = scalar_lea.vmem %s1, %s465
    %v467 = vld [vmem:[%s466] sm:$0x1]
    %469 = vrot.lane.b32.xlu0 %v467, 64
    %v470 = vpop.permute.xlu0 %469
    %472 = vst.msk [vmem:[#allocation4 + $0x6] sm:$0x1] %vm60, %v470
    %s473 = sadd.s32 %s16, 53
    %s474 = sld [smem:[#allocation3 + %s473]]
    %s475 = scalar_lea.vmem %s1, %s474
    %v476 = vld [vmem:[%s475] sm:$0x1]
    %478 = vrot.lane.b32.xlu0 %v476, 80
    %v479 = vpop.permute.xlu0 %478
    %481 = vst.msk [vmem:[#allocation4 + $0x6] sm:$0x1] %vm70, %v479
    %s482 = sadd.s32 %s16, 54
    %s483 = sld [smem:[#allocation3 + %s482]]
    %s484 = scalar_lea.vmem %s1, %s483
    %v485 = vld [vmem:[%s484] sm:$0x1]
    %487 = vrot.lane.b32.xlu0 %v485, 96
    %v488 = vpop.permute.xlu0 %487
    %490 = vst.msk [vmem:[#allocation4 + $0x6] sm:$0x1] %vm80, %v488
    %s491 = sadd.s32 %s16, 55
    %s492 = sld [smem:[#allocation3 + %s491]]
    %s493 = scalar_lea.vmem %s1, %s492
    %v494 = vld [vmem:[%s493] sm:$0x1]
    %496 = vrot.lane.b32.xlu0 %v494, 112
    %v497 = vpop.permute.xlu0 %496
    %499 = vst.msk [vmem:[#allocation4 + $0x6] sm:$0x1] %vm90, %v497
    %s500 = sadd.s32 %s16, 56
    %s501 = sld [smem:[#allocation3 + %s500]]
    %s502 = scalar_lea.vmem %s1, %s501
    %v503 = vld [vmem:[%s502] sm:$0x1]
    %504 = vst.msk [vmem:[#allocation4 + $0x7] sm:$0x1] %vm20, %v503
    %s505 = sadd.s32 %s16, 57
    %s506 = sld [smem:[#allocation3 + %s505]]
    %s507 = scalar_lea.vmem %s1, %s506
    %v508 = vld [vmem:[%s507] sm:$0x1]
    %510 = vrot.lane.b32.xlu0 %v508, 16
    %v511 = vpop.permute.xlu0 %510
    %513 = vst.msk [vmem:[#allocation4 + $0x7] sm:$0x1] %vm30, %v511
    %s514 = sadd.s32 %s16, 58
    %s515 = sld [smem:[#allocation3 + %s514]]
    %s516 = scalar_lea.vmem %s1, %s515
    %v517 = vld [vmem:[%s516] sm:$0x1]
    %519 = vrot.lane.b32.xlu0 %v517, 32
    %v520 = vpop.permute.xlu0 %519
    %522 = vst.msk [vmem:[#allocation4 + $0x7] sm:$0x1] %vm40, %v520
    %s523 = sadd.s32 %s16, 59
    %s524 = sld [smem:[#allocation3 + %s523]]
    %s525 = scalar_lea.vmem %s1, %s524
    %v526 = vld [vmem:[%s525] sm:$0x1]
    %528 = vrot.lane.b32.xlu0 %v526, 48
    %v529 = vpop.permute.xlu0 %528
    %531 = vst.msk [vmem:[#allocation4 + $0x7] sm:$0x1] %vm50, %v529
    %s532 = sadd.s32 %s16, 60
    %s533 = sld [smem:[#allocation3 + %s532]]
    %s534 = scalar_lea.vmem %s1, %s533
    %v535 = vld [vmem:[%s534] sm:$0x1]
    %537 = vrot.lane.b32.xlu0 %v535, 64
    %v538 = vpop.permute.xlu0 %537
    %540 = vst.msk [vmem:[#allocation4 + $0x7] sm:$0x1] %vm60, %v538
    %s541 = sadd.s32 %s16, 61
    %s542 = sld [smem:[#allocation3 + %s541]]
    %s543 = scalar_lea.vmem %s1, %s542
    %v544 = vld [vmem:[%s543] sm:$0x1]
    %546 = vrot.lane.b32.xlu0 %v544, 80
    %v547 = vpop.permute.xlu0 %546
    %549 = vst.msk [vmem:[#allocation4 + $0x7] sm:$0x1] %vm70, %v547
    %s550 = sadd.s32 %s16, 62
    %s551 = sld [smem:[#allocation3 + %s550]]
    %s552 = scalar_lea.vmem %s1, %s551
    %v553 = vld [vmem:[%s552] sm:$0x1]
    %555 = vrot.lane.b32.xlu0 %v553, 96
    %v556 = vpop.permute.xlu0 %555
    %558 = vst.msk [vmem:[#allocation4 + $0x7] sm:$0x1] %vm80, %v556
    %s559 = sadd.s32 %s16, 63
    %s560 = sld [smem:[#allocation3 + %s559]]
    %s561 = scalar_lea.vmem %s1, %s560
    %v562 = vld [vmem:[%s561] sm:$0x1]
    %564 = vrot.lane.b32.xlu0 %v562, 112
    %v565 = vpop.permute.xlu0 %564
    %567 = vst.msk [vmem:[#allocation4 + $0x7] sm:$0x1] %vm90, %v565
    // Predicated region
    $region6: #{tpu_custom_call.1} parent=1 // pred_check
      _
    $region7: #{tpu_custom_call.1} parent=1 // pred_check_branch
      %569 = sbr.rel (0) target = $region9
    $region8: #{tpu_custom_call.1} parent=1 // pred_region
      %s571 = ssub.s32 128, 128
      %572 = vsyncadd [#allocation5], %s571
      %s574 = sshll.u32 [#allocation4], 4
      %s575 = int_to_ptr.vmem [resolvable:$true] %s574
      %577 = dma.vmem_to_hbm [thread:$0]  %s575, 128, %s2, [#allocation5]
    $region9: #{tpu_custom_call.1} parent=1 // pred_fallthru
      _
    // Predicated region
    $region10: #{tpu_custom_call.1} parent=1 // pred_check
      _
    $region11: #{tpu_custom_call.1} parent=1 // pred_check_branch
      %579 = sbr.rel (0) target = $region13
    $region12: #{tpu_custom_call.1} parent=1 // pred_region
      %580 = dma.done [#allocation5], 128
    $region13: #{tpu_custom_call.1} parent=1 // pred_fallthru
      _
    %581 = vsyncpa [#allocation5], 1

</llo_original>
